<compile_context>
chip_gen: v7x
topology: tpu7x:2x2x1
jax: 0.10.0
libtpu: 0.0.40
codegen_flags: <defaults>
</compile_context>

<pallas_src>
import functools

import jax
import jax.numpy as jnp
from jax.experimental import pallas as pl
from jax.experimental.pallas import tpu as pltpu

_ROW_ALIGN = 256                      # pad N to a multiple of this
_XW_RESIDENT_BYTES = 4 * 1024 * 1024  # keep x@W fully VMEM-resident below this


def _round_up(n, m):
    return ((n + m - 1) // m) * m


def _pick_tm(n):
    """Row tile: as large as possible but keep >= 2 row tiles (v7x dual-TC)."""
    for c in (512, 256, 128, 64, 32, 16, 8):
        if c <= n // 2 and n % c == 0:
            return c
    return n


def _pick_tk(n):
    """Contraction tile over adj columns: large to minimize grid steps."""
    for c in (2048, 1024, 512, 256, 128, 64, 32, 16, 8):
        if c <= n and n % c == 0:
            return c
    return n


def _gcn_layer_kernel(adj_ref, xw_ref, b_ref, o_ref, acc_ref, *,
                      tk, xw_resident, apply_relu):
    """One (row-tile, k-tile) step of out = relu?(adj @ xw + b).

    adj_ref: (TM, TK) bf16                 row/col tile of adj
    xw_ref : (N, F_out) bf16 (resident) or (TK, F_out) bf16 (streamed)
    b_ref  : (1, F_out) f32
    o_ref  : (TM, F_out) f32 or bf16
    acc_ref: (TM, F_out) f32 VMEM scratch, persistent across the k axis.
    """
    k = pl.program_id(1)

    @pl.when(k == 0)
    def _():
        acc_ref[...] = jnp.zeros_like(acc_ref)

    if xw_resident:
        off = pl.multiple_of(k * tk, tk)
        xw_tile = xw_ref[pl.ds(off, tk), :]
    else:
        xw_tile = xw_ref[...]

    # Dominant MXU work: bf16 x bf16 -> f32 accumulate.
    acc_ref[...] += jnp.dot(adj_ref[...], xw_tile,
                            preferred_element_type=jnp.float32)

    @pl.when(k == pl.num_programs(1) - 1)
    def _():
        out = acc_ref[...] + b_ref[...]
        if apply_relu:
            out = jnp.maximum(out, 0.0)
        o_ref[...] = out.astype(o_ref.dtype)


def gcn_layer(adj_bf, xw_bf, b, *, apply_relu, out_dtype):
    """out = adj @ xw + b (optionally ReLU), single Pallas call.

    adj_bf: (N, N) bf16 (already cast by the caller, once per forward).
    xw_bf : (N, F_out) bf16 (x @ W, precomputed once per layer).
    b     : (1, F_out) f32.
    """
    N = adj_bf.shape[0]
    F_out = xw_bf.shape[1]
    assert adj_bf.shape == (N, N) and xw_bf.shape == (N, F_out)
    assert adj_bf.dtype == jnp.bfloat16 and xw_bf.dtype == jnp.bfloat16

    tm = _pick_tm(N)
    tk = _pick_tk(N)
    b_f32 = b.astype(jnp.float32)

    xw_resident = (N * F_out * 2) <= _XW_RESIDENT_BYTES
    if xw_resident:
        # Full xw kept in VMEM; constant block index -> DMA'd once, no re-fetch.
        xw_spec = pl.BlockSpec((N, F_out), lambda i, k: (0, 0))
        xw_buf_bytes = 2 * N * F_out * 2
    else:
        xw_spec = pl.BlockSpec((tk, F_out), lambda i, k: (k, 0))
        xw_buf_bytes = 2 * tk * F_out * 2

    out_itemsize = jnp.dtype(out_dtype).itemsize
    vmem_est = (2 * tm * tk * 2          # adj tiles, double-buffered bf16
                + xw_buf_bytes           # xw buffers
                + tm * F_out * 4         # f32 accumulator scratch
                + 2 * tm * F_out * out_itemsize  # output tiles
                + 2 * 8 * 128 * 4)       # bias (padded)
    vmem_limit = min(max(2 * vmem_est, 32 * 1024 * 1024), 48 * 1024 * 1024)

    kernel = functools.partial(_gcn_layer_kernel, tk=tk,
                               xw_resident=xw_resident, apply_relu=apply_relu)
    grid = (N // tm, N // tk)

    return pl.pallas_call(
        kernel,
        out_shape=jax.ShapeDtypeStruct((N, F_out), out_dtype),
        grid_spec=pltpu.PrefetchScalarGridSpec(
            num_scalar_prefetch=0,
            grid=grid,
            in_specs=[
                pl.BlockSpec((tm, tk), lambda i, k: (i, k)),       # adj tile
                xw_spec,                                           # xw
                pl.BlockSpec((1, F_out), lambda i, k: (0, 0)),     # bias
            ],
            out_specs=pl.BlockSpec((tm, F_out), lambda i, k: (i, 0)),
            scratch_shapes=[pltpu.VMEM((tm, F_out), jnp.float32)],
        ),
        compiler_params=pltpu.CompilerParams(
            # Row axis parallel (feeds both v7x TCs; no-op on v5e/v6e).
            # K-reduction axis must stay "arbitrary" (accumulator carry).
            dimension_semantics=("parallel", "arbitrary"),
            vmem_limit_bytes=int(vmem_limit)),
    )(adj_bf, xw_bf, b_f32)


def _pad_and_cast(adj, x):
    """Zero-pad N to a 256 multiple (once) and cast adj to bf16 (once)."""
    n = adj.shape[0]
    n_pad = _round_up(n, _ROW_ALIGN)
    if n_pad != n:
        adj = jnp.pad(adj, ((0, n_pad - n), (0, n_pad - n)))
        x = jnp.pad(x, ((0, n_pad - n), (0, 0)))
    return adj.astype(jnp.bfloat16), x


class GNN:
    """JAX/Pallas equivalent of backbones/gnn.GNN with GCN layers filled in."""

    def __init__(self, layer_dims, key):
        # layer_dims: list of (in_features, out_features) per layer.
        self.params = []
        for (f_in, f_out) in layer_dims:
            key, wk = jax.random.split(key)
            w = jax.random.normal(wk, (f_in, f_out), jnp.float32) * (
                1.0 / jnp.sqrt(jnp.float32(f_in)))
            b = jnp.zeros((1, f_out), jnp.float32)
            self.params.append((w, b))

    def _run(self, x, adj_t, layer_params, relu_flags):
        n = x.shape[0]
        adj_bf, x_p = _pad_and_cast(adj_t, x)    # cast/pad ONCE for all layers
        for i, ((w, b), do_relu) in enumerate(zip(layer_params, relu_flags)):
            last = i == len(layer_params) - 1
            # Tiny per-layer prologue matmul: xw = x @ W (f32 accumulation),
            # fed to the streaming kernel as bf16.
            xw = jnp.dot(x_p.astype(jnp.float32), w,
                         preferred_element_type=jnp.float32).astype(jnp.bfloat16)
            out_dtype = jnp.float32 if last else jnp.bfloat16
            x_p = gcn_layer(adj_bf, xw, b, apply_relu=do_relu,
                            out_dtype=out_dtype)
        return x_p[:n]

    def forward(self, x, adj_t):
        # Mirrors: for layer in layers[:-1]: x = relu(layer(x, adj_t)); last w/o relu.
        relu_flags = [True] * (len(self.params) - 1) + [False]
        return self._run(x, adj_t, self.params, relu_flags)

    def encode(self, x, adj_t):
        layer_params = self.params[:-1]
        relu_flags = [True] * len(layer_params)
        return self._run(x, adj_t, layer_params, relu_flags)

    # TODO(synk): encode_noise uses torch.rand_like on CUDA; noise injection is
    # host/JAX-side randomness outside the kernel hot path, so it is omitted.


def _make_normalized_adj(key, n_nodes):
    """Deterministic dense symmetric adjacency with self-loops, GCN-normalized."""
    logits = jax.random.uniform(key, (n_nodes, n_nodes))
    a = (logits > 0.9).astype(jnp.float32)
    a = jnp.maximum(a, a.T)                      # symmetrize
    a = a + jnp.eye(n_nodes, dtype=jnp.float32)  # self loops
    deg = jnp.sum(a, axis=1)
    d_inv_sqrt = 1.0 / jnp.sqrt(deg)
    return a * d_inv_sqrt[:, None] * d_inv_sqrt[None, :]


def _ref_layer(adj_bf, x, w, b, apply_relu, out_dtype):
    """Plain-JAX reference mirroring the kernel math exactly:
    bf16 adj, bf16 x@W, f32 accumulation, bias, optional ReLU, output cast."""
    xw = jnp.dot(x.astype(jnp.float32), w,
                 preferred_element_type=jnp.float32).astype(jnp.bfloat16)
    out = jnp.dot(adj_bf, xw, preferred_element_type=jnp.float32) + b
    if apply_relu:
        out = jnp.maximum(out, 0.0)
    return out.astype(out_dtype)


if __name__ == "__main__":
    key = jax.random.PRNGKey(0)
    k_adj, k_x, k_params = jax.random.split(key, 3)

    N_NODES = 512     # exercises the (row, k) = (2, 1) tiled grid (tm=256, tk=512)
    F_IN = 128
    F_HIDDEN = 128
    F_OUT = 128

    adj_t = _make_normalized_adj(k_adj, N_NODES)
    x = jax.random.normal(k_x, (N_NODES, F_IN), jnp.float32)

    model = GNN([(F_IN, F_HIDDEN), (F_HIDDEN, F_OUT)], k_params)

    out = model.forward(x, adj_t)
    out = jax.block_until_ready(out)

    # Reference check in plain JAX (same bf16 casts / same f32 accumulation).
    adj_bf = adj_t.astype(jnp.bfloat16)
    (w1, b1), (w2, b2) = model.params
    h_ref = _ref_layer(adj_bf, x, w1, b1, True, jnp.bfloat16)
    out_ref = _ref_layer(adj_bf, h_ref, w2, b2, False, jnp.float32)

    assert out.shape == (N_NODES, F_OUT)
    assert out.dtype == jnp.float32
    assert jnp.allclose(out, out_ref, atol=2e-2, rtol=2e-2), (
        float(jnp.max(jnp.abs(out - out_ref))))

    # Also exercise encode() (hidden representation, ReLU'd, f32 out).
    enc = jax.block_until_ready(model.encode(x, adj_t))
    enc_ref = _ref_layer(adj_bf, x, w1, b1, True, jnp.float32)
    assert enc.shape == (N_NODES, F_HIDDEN)
    assert jnp.allclose(enc, enc_ref, atol=2e-2, rtol=2e-2), (
        float(jnp.max(jnp.abs(enc - enc_ref))))

    print("KERNEL_OK")
</pallas_src>

<mosaic_0001>
module attributes {stable_mosaic.version = 11 : i64} {
  func.func @_gcn_layer_kernel(%arg0: i32, %arg1: i32, %arg2: memref<256x512xbf16, #tpu.memory_space<vmem>>, %arg3: memref<512x128xbf16, #tpu.memory_space<vmem>>, %arg4: memref<1x128xf32, #tpu.memory_space<vmem>>, %arg5: memref<256x128xbf16, #tpu.memory_space<vmem>>, %arg6: memref<256x128xf32, #tpu.memory_space<vmem>>) attributes {dimension_semantics = [#tpu.dimension_semantics<parallel>, #tpu.dimension_semantics<arbitrary>], iteration_bounds = array<i64: 2, 1>, scalar_prefetch = 0 : i64, scratch_operands = 1 : i64, tpu.core_type = #tpu.core_type<tc>, window_params = [{transform_indices = @transform_0, window_bounds = array<i64: 256, 512>}, {pipeline_mode = #tpu.pipeline_mode<synchronous>, transform_indices = @transform_1, window_bounds = array<i64: 512, 128>}, {pipeline_mode = #tpu.pipeline_mode<synchronous>, transform_indices = @transform_2, window_bounds = array<i64: 1, 128>}, {transform_indices = @transform_3, window_bounds = array<i64: 256, 128>}]} {
    %c0_i32 = arith.constant 0 : i32
    %0 = arith.cmpi eq, %arg1, %c0_i32 : i32
    %1 = arith.extui %0 : i1 to i32
    %c0_i32_0 = arith.constant 0 : i32
    %2 = arith.cmpi ne, %1, %c0_i32_0 : i32
    scf.if %2 {
      %cst_9 = arith.constant 0.000000e+00 : f32
      %15 = vector.broadcast %cst_9 : f32 to vector<256x128xf32>
      %c0_10 = arith.constant 0 : index
      %c0_11 = arith.constant 0 : index
      %16 = vector.load %arg6[%c0_10, %c0_11] : memref<256x128xf32, #tpu.memory_space<vmem>>, vector<256x128xf32>
      tpu.vector_store %arg6[%c0_10, %c0_11], %15 {strides = array<i32>} : memref<256x128xf32, #tpu.memory_space<vmem>>, vector<256x128xf32>,
    } else {
    }
    %c512_i32 = arith.constant 512 : i32
    %3 = arith.muli %arg1, %c512_i32 : i32
    %4 = tpu.assume_multiple %3, 512 : i32
    %5 = arith.index_cast %4 : i32 to index
    %c0 = arith.constant 0 : index
    %6 = vector.load %arg3[%5, %c0] : memref<512x128xbf16, #tpu.memory_space<vmem>>, vector<512x128xbf16>
    %c0_1 = arith.constant 0 : index
    %c0_2 = arith.constant 0 : index
    %7 = vector.load %arg6[%c0_1, %c0_2] : memref<256x128xf32, #tpu.memory_space<vmem>>, vector<256x128xf32>
    %c0_3 = arith.constant 0 : index
    %c0_4 = arith.constant 0 : index
    %8 = vector.load %arg2[%c0_3, %c0_4] : memref<256x512xbf16, #tpu.memory_space<vmem>>, vector<256x512xbf16>
    %cst = arith.constant dense<0.000000e+00> : vector<256x128xf32>
    %9 = tpu.matmul %8, %6, %cst {dimension_numbers = #tpu.dot_dimension_numbers<[1], [0], [0], [1], [0, 0, 1, 1], [], []>} : vector<256x512xbf16>, vector<512x128xbf16>, vector<256x128xf32> -> vector<256x128xf32>
    %10 = arith.addf %7, %9 : vector<256x128xf32>
    %c0_5 = arith.constant 0 : index
    %c0_6 = arith.constant 0 : index
    %11 = vector.load %arg6[%c0_5, %c0_6] : memref<256x128xf32, #tpu.memory_space<vmem>>, vector<256x128xf32>
    tpu.vector_store %arg6[%c0_5, %c0_6], %10 {strides = array<i32>} : memref<256x128xf32, #tpu.memory_space<vmem>>, vector<256x128xf32>,
    %c0_i32_7 = arith.constant 0 : i32
    %12 = arith.cmpi eq, %arg1, %c0_i32_7 : i32
    %13 = arith.extui %12 : i1 to i32
    %c0_i32_8 = arith.constant 0 : i32
    %14 = arith.cmpi ne, %13, %c0_i32_8 : i32
    scf.if %14 {
      %c0_9 = arith.constant 0 : index
      %c0_10 = arith.constant 0 : index
      %15 = vector.load %arg6[%c0_9, %c0_10] : memref<256x128xf32, #tpu.memory_space<vmem>>, vector<256x128xf32>
      %c0_11 = arith.constant 0 : index
      %c0_12 = arith.constant 0 : index
      %16 = vector.load %arg4[%c0_11, %c0_12] : memref<1x128xf32, #tpu.memory_space<vmem>>, vector<1x128xf32>
      %17 = vector.broadcast %16 : vector<1x128xf32> to vector<256x128xf32>
      %18 = arith.addf %15, %17 : vector<256x128xf32>
      %cst_13 = arith.constant 0.000000e+00 : f32
      %19 = vector.broadcast %cst_13 : f32 to vector<256x128xf32>
      %20 = arith.maximumf %18, %19 : vector<256x128xf32>
      %21 = arith.truncf %20 : vector<256x128xf32> to vector<256x128xbf16>
      %c0_14 = arith.constant 0 : index
      %c0_15 = arith.constant 0 : index
      %22 = vector.load %arg5[%c0_14, %c0_15] : memref<256x128xbf16, #tpu.memory_space<vmem>>, vector<256x128xbf16>
      tpu.vector_store %arg5[%c0_14, %c0_15], %21 {strides = array<i32>} : memref<256x128xbf16, #tpu.memory_space<vmem>>, vector<256x128xbf16>,
    } else {
    }
    return
  }
  func.func @transform_0(%arg0: i32, %arg1: i32) -> (i32, i32) {
    %c0_i32 = arith.constant 0 : i32
    return %arg0, %arg1 : i32, i32
  }
  func.func @transform_1(%arg0: i32, %arg1: i32) -> (i32, i32) {
    %c0_i32 = arith.constant 0 : i32
    %c0_i32_0 = arith.constant 0 : i32
    %c0_i32_1 = arith.constant 0 : i32
    return %c0_i32, %c0_i32_0 : i32, i32
  }
  func.func @transform_2(%arg0: i32, %arg1: i32) -> (i32, i32) {
    %c0_i32 = arith.constant 0 : i32
    %c0_i32_0 = arith.constant 0 : i32
    %c0_i32_1 = arith.constant 0 : i32
    return %c0_i32, %c0_i32_0 : i32, i32
  }
  func.func @transform_3(%arg0: i32, %arg1: i32) -> (i32, i32) {
    %c0_i32 = arith.constant 0 : i32
    %c0_i32_0 = arith.constant 0 : i32
    return %arg0, %c0_i32 : i32, i32
  }
}

</mosaic_0001>

<llo_original>
// kernel: tpu_custom_call.1
$region0: #{tpu_custom_call.1}
  #allocation0 [shape = 'u32[]', space=smem, size = 0x4, offset = 0x4, fixed_abs, tag = 'smem constant byte address 0x4 - core index']
  #allocation1 [shape = 'u32[144,128]{1,0:T(1,128)}', space=vmem, size = 0x12000, scoped, tag = 'internal scratch']
  #allocation2 [shape = 'f32[256,128]{1,0:T(8,128)}', space=vmem, size = 0x20000, scoped, tag = 'scratch operand']
  %s0 = inlined_call_operand.hbm [shape: bf16[512,512], index: 0, kind: input, shape index: {}]
  %s1 = inlined_call_operand.hbm [shape: bf16[512,128], index: 1, kind: input, shape index: {}]
  %s2 = inlined_call_operand.vmem [shape: f32[1,128], index: 2, kind: input, shape index: {}]
  %s3 = inlined_call_operand.hbm [shape: bf16[512,128], index: 3, kind: output, shape index: {}]
  %s4 = sld [smem:[#allocation0]]
  $region61: #{tpu_custom_call.1} parent=0
    _
  %s6 = ssub.s32 1, %s4
  %s7 = scalar_select 0, %s6, %s4
  $region1: #{tpu_custom_call.1} parent=0
    #allocation3 [shape = 'u8[524288]{0}', space=vmem, size = 0x80000, scoped, tag = 'input window, operand 0']
    #allocation4 [shape = 's32[2]{0}', space=sflag, size = 0x8, scoped, tag = 'scoped memory for tpu_custom_call.1']
    #allocation5 [shape = 's32[2]{0}', space=sflag, size = 0x8, scoped, tag = 'scoped memory for tpu_custom_call.1']
    #allocation6 [shape = 'u8[131072]{0}', space=vmem, size = 0x20000, scoped, tag = 'input window, operand 1, single buffered']
    #allocation7 [shape = 's32[1]{0}', space=sflag, size = 0x4, scoped, tag = 'scoped memory for tpu_custom_call.1']
    #allocation8 [shape = 'u8[131072]{0}', space=vmem, size = 0x20000, scoped, tag = 'output window, operand 0']
    %8 = vsyncpa [#allocation4], 0
    %s9 = scalar_lea.sflag [#allocation4], 1
    %10 = vsyncpa %s9, 0
    %11 = vsyncpa [#allocation7], 0
    %12 = vsyncpa [#allocation5], 0
    %s13 = scalar_lea.sflag [#allocation5], 1
    %14 = vsyncpa %s13, 0
    loop: start=0, step=1, limit=4
    $region2: #{tpu_custom_call.1} parent=1 // loop_pre_header
      _
    $region3: #{tpu_custom_call.1} parent=1 // loop_header
      %s16 = sphi 0, %s20
      %p17 = scmp.ge.s32.totalorder %s16, 4
      %s23 = sphi 0, %s35
      %s24 = sphi 0, %s31
      %s25 = sphi 0, %s23
      %s26 = sphi 0, %s24
      %s27 = sphi 0, %s25
      %s28 = sphi 0, %s26
      %s40 = sphi 0, %s42
      %s43 = sphi 0, %s40
      %s44 = sphi 0, %s43
      %s60 = sphi 0, %s44
      %s64 = sphi 0, %s64
      %s66 = sphi 0, %s64
      %s67 = sphi 0, %s66
      %s81 = sphi 0, %s67
      %s85 = sphi 0, %s85
      %s87 = sphi 0, %s85
      %s88 = sphi 0, %s87
      %s102 = sphi 0, %s88
      %s108 = sphi 0, %s110
      %s111 = sphi 0, %s108
      %s112 = sphi 0, %s111
      %s128 = sphi 0, %s112
    $region4: #{tpu_custom_call.1} parent=1 // loop_header_branch
      %19 = sbr.rel (%p17) target = $region8
    $region5: #{tpu_custom_call.1} parent=1 // loop_body
      %s21 = ssub.s32 %s16, 1
      %s22 = ssub.s32 %s16, 2
      %s29 = sadd.s32 1, %s24
      %p30 = scmp.ge.s32.totalorder %s29, 1
      %s31 = scalar_select %p30, 0, %s29
      %s32 = sadd.s32 1, %s23
      %s33 = scalar_select %p30, %s32, %s23
      %p34 = scmp.ge.s32.totalorder %s33, 2
      %s35 = scalar_select %p34, 0, %s33
      %s36 = ssub.s32 %s23, %s35
      %s37 = ssub.s32 %s24, %s31
      %s38 = sor.u32 %s36, %s37
      %p39 = scmp.eq.s32.totalorder %s38, 0
      %s41 = sadd.s32 %s40, 1
      %s42 = scalar_select %p39, %s40, %s41
      %p45 = pneg %p39
      %p46 = scmp.eq.s32.totalorder %s16, 1
      %p47 = por %p45, %p46
      %p48 = scmp.ne.s32.totalorder %s40, %s43
      %p49 = scmp.eq.s32.totalorder %s16, 0
      %p50 = por %p48, %p49
      %p51 = scmp.ne.s32.totalorder %s40, %s43
      %p52 = scmp.eq.s32.totalorder %s21, 1
      %p53 = por %p51, %p52
      %p54 = scmp.ne.s32.totalorder %s43, %s44
      %p55 = scmp.eq.s32.totalorder %s21, 0
      %p56 = por %p54, %p55
      %p57 = scmp.ne.s32.totalorder %s43, %s44
      %p58 = scmp.eq.s32.totalorder %s22, 1
      %p59 = por %p57, %p58
      %p61 = scmp.ne.s32.totalorder %s44, %s60
      %p62 = scmp.eq.s32.totalorder %s22, 0
      %p63 = por %p61, %p62
      %s65 = sadd.s32 %s64, 1
      %p68 = scmp.eq.s32.totalorder %s16, 1
      %p69 = scmp.ne.s32.totalorder %s64, %s66
      %p70 = scmp.eq.s32.totalorder %s16, 0
      %p71 = por %p69, %p70
      %p72 = scmp.ne.s32.totalorder %s64, %s66
      %p73 = scmp.eq.s32.totalorder %s21, 1
      %p74 = por %p72, %p73
      %p75 = scmp.ne.s32.totalorder %s66, %s67
      %p76 = scmp.eq.s32.totalorder %s21, 0
      %p77 = por %p75, %p76
      %p78 = scmp.ne.s32.totalorder %s66, %s67
      %p79 = scmp.eq.s32.totalorder %s22, 1
      %p80 = por %p78, %p79
      %p82 = scmp.ne.s32.totalorder %s67, %s81
      %p83 = scmp.eq.s32.totalorder %s22, 0
      %p84 = por %p82, %p83
      %s86 = sadd.s32 %s85, 1
      %p89 = scmp.eq.s32.totalorder %s16, 1
      %p90 = scmp.ne.s32.totalorder %s85, %s87
      %p91 = scmp.eq.s32.totalorder %s16, 0
      %p92 = por %p90, %p91
      %p93 = scmp.ne.s32.totalorder %s85, %s87
      %p94 = scmp.eq.s32.totalorder %s21, 1
      %p95 = por %p93, %p94
      %p96 = scmp.ne.s32.totalorder %s87, %s88
      %p97 = scmp.eq.s32.totalorder %s21, 0
      %p98 = por %p96, %p97
      %p99 = scmp.ne.s32.totalorder %s87, %s88
      %p100 = scmp.eq.s32.totalorder %s22, 1
      %p101 = por %p99, %p100
      %p103 = scmp.ne.s32.totalorder %s88, %s102
      %p104 = scmp.eq.s32.totalorder %s22, 0
      %p105 = por %p103, %p104
      %s106 = ssub.s32 %s23, %s35
      %p107 = scmp.eq.s32.totalorder %s106, 0
      %s109 = sadd.s32 %s108, 1
      %s110 = scalar_select %p107, %s108, %s109
      %p113 = pneg %p107
      %p114 = scmp.eq.s32.totalorder %s16, 1
      %p115 = por %p113, %p114
      %p116 = scmp.ne.s32.totalorder %s108, %s111
      %p117 = scmp.eq.s32.totalorder %s16, 0
      %p118 = por %p116, %p117
      %p119 = scmp.ne.s32.totalorder %s108, %s111
      %p120 = scmp.eq.s32.totalorder %s21, 1
      %p121 = por %p119, %p120
      %p122 = scmp.ne.s32.totalorder %s111, %s112
      %p123 = scmp.eq.s32.totalorder %s21, 0
      %p124 = por %p122, %p123
      %p125 = scmp.ne.s32.totalorder %s111, %s112
      %p126 = scmp.eq.s32.totalorder %s22, 1
      %p127 = por %p125, %p126
      %p129 = scmp.ne.s32.totalorder %s112, %s128
      %p130 = scmp.eq.s32.totalorder %s22, 0
      %p131 = por %p129, %p130
      %p132 = scmp.le.s32.totalorder 1, %s16
      %p133 = scmp.lt.s32.totalorder %s16, 3
      %p134 = pnand %p132, %p133
      %p135 = pneg %p134
      // Predicated region
      $region9: #{tpu_custom_call.1} parent=5 // pred_check
        _
      $region10: #{tpu_custom_call.1} parent=5 // pred_check_branch
        %137 = sbr.rel (%p134) target = $region12
      $region11: #{tpu_custom_call.1} parent=5 // pred_region
        %s138 = ssub.s32 %s16, 1
        // Predicated region
        $region13: #{tpu_custom_call.1} parent=11 // pred_check
          %p139 = pneg %p77
        $region14: #{tpu_custom_call.1} parent=11 // pred_check_branch
          %141 = sbr.rel (%p139) target = $region16
        $region15: #{tpu_custom_call.1} parent=11 // pred_region
          %s143 = ssub.s32 4096, 4096
          %144 = vsyncadd [#allocation7], %s143
          %s145 = sshll.u32 [#allocation6], 4
          %s146 = int_to_ptr.vmem [resolvable:$true] %s145
          %151 = dma.hbm_to_vmem [thread:$0]  %s1, 4096, %s146, [#allocation7], 64, 64, 4
        $region16: #{tpu_custom_call.1} parent=11 // pred_fallthru
          _
        // Predicated region
        $region17: #{tpu_custom_call.1} parent=11 // pred_check
          %p152 = pneg %p98
        $region18: #{tpu_custom_call.1} parent=11 // pred_check_branch
          %154 = sbr.rel (%p152) target = $region20
        $region19: #{tpu_custom_call.1} parent=11 // pred_region
          _
        $region20: #{tpu_custom_call.1} parent=11 // pred_fallthru
          _
      $region12: #{tpu_custom_call.1} parent=5 // pred_fallthru
        _
      %p155 = scmp.lt.s32.totalorder %s16, 2
      // Predicated region
      $region21: #{tpu_custom_call.1} parent=5 // pred_check
        %p156 = pneg %p155
      $region22: #{tpu_custom_call.1} parent=5 // pred_check_branch
        %158 = sbr.rel (%p156) target = $region24
      $region23: #{tpu_custom_call.1} parent=5 // pred_region
        // Predicated region
        $region25: #{tpu_custom_call.1} parent=23 // pred_check
          %p159 = pneg %p50
        $region26: #{tpu_custom_call.1} parent=23 // pred_check_branch
          %161 = sbr.rel (%p159) target = $region28
        $region27: #{tpu_custom_call.1} parent=23 // pred_region
          %s162 = sand.u32 %s40, 1
          %s163 = scalar_lea.sflag [#allocation4], %s162
          %s164 = sand.u32 %s40, 1
          %s165 = smul.addr %s164, 512
          %s166 = scalar_lea.vmem [#allocation3], %s165
          %s167 = smul.u32 32, %s23
          %s168 = smul.u32 4, %s24
          %s170 = ssub.s32 8192, 8192
          %171 = vsyncadd %s163, %s170
          %s172 = smul.addr %s167, 4
          %s173 = sadd.s32 %s168, %s172
          %s174 = smul.addr %s173, 64
          %s175 = scalar_lea.hbm %s0, %s174
          %s176 = sshll.u32 %s166, 4
          %s177 = int_to_ptr.vmem [resolvable:$true] %s176
          %182 = dma.hbm_to_vmem [thread:$0]  %s175, 8192, %s177, %s163, 256, 256, 16
        $region28: #{tpu_custom_call.1} parent=23 // pred_fallthru
          _
      $region24: #{tpu_custom_call.1} parent=5 // pred_fallthru
        _
      %p183 = scmp.le.s32.totalorder 1, %s16
      %p184 = scmp.lt.s32.totalorder %s16, 3
      %p185 = pnand %p183, %p184
      %p186 = pneg %p185
      // Predicated region
      $region29: #{tpu_custom_call.1} parent=5 // pred_check
        _
      $region30: #{tpu_custom_call.1} parent=5 // pred_check_branch
        %188 = sbr.rel (%p185) target = $region32
      $region31: #{tpu_custom_call.1} parent=5 // pred_region
        %s189 = ssub.s32 %s16, 1
        %s190 = sand.u32 %s43, 1
        %s191 = scalar_lea.sflag [#allocation4], %s190
        %s192 = sand.u32 %s43, 1
        %s193 = smul.addr %s192, 512
        %s194 = scalar_lea.vmem [#allocation3], %s193
        // Predicated region
        $region33: #{tpu_custom_call.1} parent=31 // pred_check
          %p195 = pneg %p56
        $region34: #{tpu_custom_call.1} parent=31 // pred_check_branch
          %197 = sbr.rel (%p195) target = $region36
        $region35: #{tpu_custom_call.1} parent=31 // pred_region
          %198 = dma.done %s191, 8192
        $region36: #{tpu_custom_call.1} parent=31 // pred_fallthru
          _
        // Predicated region
        $region37: #{tpu_custom_call.1} parent=31 // pred_check
          %p199 = pneg %p77
        $region38: #{tpu_custom_call.1} parent=31 // pred_check_branch
          %201 = sbr.rel (%p199) target = $region40
        $region39: #{tpu_custom_call.1} parent=31 // pred_region
          %202 = dma.done [#allocation7], 4096
        $region40: #{tpu_custom_call.1} parent=31 // pred_fallthru
          _
        %s203 = sand.u32 %s43, 1
        %s204 = scalar_lea.sflag [#allocation4], %s203
        %s205 = sand.u32 %s43, 1
        %s206 = smul.addr %s205, 512
        %s207 = scalar_lea.vmem [#allocation3], %s206
        %p208 = pneg %p56
        %p209 = pneg %p53
        %p210 = pneg %p77
        %p211 = pneg %p74
        %p212 = pneg %p98
        %p213 = pneg %p95
        %p214 = pneg %p124
        %p215 = pneg %p121
        %s216 = sand.u32 %s111, 1
        %s217 = scalar_lea.sflag [#allocation5], %s216
        %s218 = sand.u32 %s111, 1
        %s219 = smul.addr %s218, 128
        %s220 = scalar_lea.vmem [#allocation8], %s219
        %s221 = smul.u32 32, %s25
        %s222 = smul.u32 4, %s26
        %s223 = smul.u32 32, %s25
        %p225 = scmp.eq.s32.totalorder %s26, 0
        // Predicated region
        $region41: #{tpu_custom_call.1} parent=31 // pred_check
          %p226 = pneg %p225
        $region42: #{tpu_custom_call.1} parent=31 // pred_check_branch
          %228 = sbr.rel (%p226) target = $region44
        $region43: #{tpu_custom_call.1} parent=31 // pred_region
          %229 = vst [vmem:[#allocation2] sm:$0xff] 0.0
          %230 = vst [vmem:[#allocation2 + $0x8] sm:$0xff] 0.0
          %231 = vst [vmem:[#allocation2 + $0x10] sm:$0xff] 0.0
          %232 = vst [vmem:[#allocation2 + $0x18] sm:$0xff] 0.0
          %233 = vst [vmem:[#allocation2 + $0x20] sm:$0xff] 0.0
          %234 = vst [vmem:[#allocation2 + $0x28] sm:$0xff] 0.0
          %235 = vst [vmem:[#allocation2 + $0x30] sm:$0xff] 0.0
          %236 = vst [vmem:[#allocation2 + $0x38] sm:$0xff] 0.0
          %237 = vst [vmem:[#allocation2 + $0x40] sm:$0xff] 0.0
          %238 = vst [vmem:[#allocation2 + $0x48] sm:$0xff] 0.0
          %239 = vst [vmem:[#allocation2 + $0x50] sm:$0xff] 0.0
          %240 = vst [vmem:[#allocation2 + $0x58] sm:$0xff] 0.0
          %241 = vst [vmem:[#allocation2 + $0x60] sm:$0xff] 0.0
          %242 = vst [vmem:[#allocation2 + $0x68] sm:$0xff] 0.0
          %243 = vst [vmem:[#allocation2 + $0x70] sm:$0xff] 0.0
          %244 = vst [vmem:[#allocation2 + $0x78] sm:$0xff] 0.0
          %245 = vst [vmem:[#allocation2 + $0x80] sm:$0xff] 0.0
          %246 = vst [vmem:[#allocation2 + $0x88] sm:$0xff] 0.0
          %247 = vst [vmem:[#allocation2 + $0x90] sm:$0xff] 0.0
          %248 = vst [vmem:[#allocation2 + $0x98] sm:$0xff] 0.0
          %249 = vst [vmem:[#allocation2 + $0xa0] sm:$0xff] 0.0
          %250 = vst [vmem:[#allocation2 + $0xa8] sm:$0xff] 0.0
          %251 = vst [vmem:[#allocation2 + $0xb0] sm:$0xff] 0.0
          %252 = vst [vmem:[#allocation2 + $0xb8] sm:$0xff] 0.0
          %253 = vst [vmem:[#allocation2 + $0xc0] sm:$0xff] 0.0
          %254 = vst [vmem:[#allocation2 + $0xc8] sm:$0xff] 0.0
          %255 = vst [vmem:[#allocation2 + $0xd0] sm:$0xff] 0.0
          %256 = vst [vmem:[#allocation2 + $0xd8] sm:$0xff] 0.0
          %257 = vst [vmem:[#allocation2 + $0xe0] sm:$0xff] 0.0
          %258 = vst [vmem:[#allocation2 + $0xe8] sm:$0xff] 0.0
          %259 = vst [vmem:[#allocation2 + $0xf0] sm:$0xff] 0.0
          %260 = vst [vmem:[#allocation2 + $0xf8] sm:$0xff] 0.0
        $region44: #{tpu_custom_call.1} parent=31 // pred_fallthru
          _
        %s261 = smul.u32 %s26, 512
        %s262 = sshra.s32 %s261, 3
        %s263 = sand.u32 %s261, 7
        %s264 = smul.addr %s262, 4
        %s265 = scalar_lea.vmem [#allocation6], %s264
        %v266 = vld [vmem:[%s265] sm:$0xf]
        %v267 = vld [vmem:[%s265 + $0x4] sm:$0xf]
        %v268 = vld [vmem:[%s265 + $0x8] sm:$0xf]
        %v269 = vld [vmem:[%s265 + $0xc] sm:$0xf]
        %v270 = vld [vmem:[%s265 + $0x10] sm:$0xf]
        %v271 = vld [vmem:[%s265 + $0x14] sm:$0xf]
        %v272 = vld [vmem:[%s265 + $0x18] sm:$0xf]
        %v273 = vld [vmem:[%s265 + $0x1c] sm:$0xf]
        %v274 = vld [vmem:[%s265 + $0x20] sm:$0xf]
        %v275 = vld [vmem:[%s265 + $0x24] sm:$0xf]
        %v276 = vld [vmem:[%s265 + $0x28] sm:$0xf]
        %v277 = vld [vmem:[%s265 + $0x2c] sm:$0xf]
        %v278 = vld [vmem:[%s265 + $0x30] sm:$0xf]
        %v279 = vld [vmem:[%s265 + $0x34] sm:$0xf]
        %v280 = vld [vmem:[%s265 + $0x38] sm:$0xf]
        %v281 = vld [vmem:[%s265 + $0x3c] sm:$0xf]
        %v282 = vld [vmem:[%s265 + $0x40] sm:$0xf]
        %v283 = vld [vmem:[%s265 + $0x44] sm:$0xf]
        %v284 = vld [vmem:[%s265 + $0x48] sm:$0xf]
        %v285 = vld [vmem:[%s265 + $0x4c] sm:$0xf]
        %v286 = vld [vmem:[%s265 + $0x50] sm:$0xf]
        %v287 = vld [vmem:[%s265 + $0x54] sm:$0xf]
        %v288 = vld [vmem:[%s265 + $0x58] sm:$0xf]
        %v289 = vld [vmem:[%s265 + $0x5c] sm:$0xf]
        %v290 = vld [vmem:[%s265 + $0x60] sm:$0xf]
        %v291 = vld [vmem:[%s265 + $0x64] sm:$0xf]
        %v292 = vld [vmem:[%s265 + $0x68] sm:$0xf]
        %v293 = vld [vmem:[%s265 + $0x6c] sm:$0xf]
        %v294 = vld [vmem:[%s265 + $0x70] sm:$0xf]
        %v295 = vld [vmem:[%s265 + $0x74] sm:$0xf]
        %v296 = vld [vmem:[%s265 + $0x78] sm:$0xf]
        %v297 = vld [vmem:[%s265 + $0x7c] sm:$0xf]
        %v298 = vld [vmem:[%s265 + $0x80] sm:$0xf]
        %v299 = vld [vmem:[%s265 + $0x84] sm:$0xf]
        %v300 = vld [vmem:[%s265 + $0x88] sm:$0xf]
        %v301 = vld [vmem:[%s265 + $0x8c] sm:$0xf]
        %v302 = vld [vmem:[%s265 + $0x90] sm:$0xf]
        %v303 = vld [vmem:[%s265 + $0x94] sm:$0xf]
        %v304 = vld [vmem:[%s265 + $0x98] sm:$0xf]
        %v305 = vld [vmem:[%s265 + $0x9c] sm:$0xf]
        %v306 = vld [vmem:[%s265 + $0xa0] sm:$0xf]
        %v307 = vld [vmem:[%s265 + $0xa4] sm:$0xf]
        %v308 = vld [vmem:[%s265 + $0xa8] sm:$0xf]
        %v309 = vld [vmem:[%s265 + $0xac] sm:$0xf]
        %v310 = vld [vmem:[%s265 + $0xb0] sm:$0xf]
        %v311 = vld [vmem:[%s265 + $0xb4] sm:$0xf]
        %v312 = vld [vmem:[%s265 + $0xb8] sm:$0xf]
        %v313 = vld [vmem:[%s265 + $0xbc] sm:$0xf]
        %v314 = vld [vmem:[%s265 + $0xc0] sm:$0xf]
        %v315 = vld [vmem:[%s265 + $0xc4] sm:$0xf]
        %v316 = vld [vmem:[%s265 + $0xc8] sm:$0xf]
        %v317 = vld [vmem:[%s265 + $0xcc] sm:$0xf]
        %v318 = vld [vmem:[%s265 + $0xd0] sm:$0xf]
        %v319 = vld [vmem:[%s265 + $0xd4] sm:$0xf]
        %v320 = vld [vmem:[%s265 + $0xd8] sm:$0xf]
        %v321 = vld [vmem:[%s265 + $0xdc] sm:$0xf]
        %v322 = vld [vmem:[%s265 + $0xe0] sm:$0xf]
        %v323 = vld [vmem:[%s265 + $0xe4] sm:$0xf]
        %v324 = vld [vmem:[%s265 + $0xe8] sm:$0xf]
        %v325 = vld [vmem:[%s265 + $0xec] sm:$0xf]
        %v326 = vld [vmem:[%s265 + $0xf0] sm:$0xf]
        %v327 = vld [vmem:[%s265 + $0xf4] sm:$0xf]
        %v328 = vld [vmem:[%s265 + $0xf8] sm:$0xf]
        %v329 = vld [vmem:[%s265 + $0xfc] sm:$0xf]
        %v330 = vld [vmem:[#allocation2] sm:$0xff]
        %v331 = vld [vmem:[#allocation2 + $0x8] sm:$0xff]
        %v332 = vld [vmem:[#allocation2 + $0x10] sm:$0xff]
        %v333 = vld [vmem:[#allocation2 + $0x18] sm:$0xff]
        %v334 = vld [vmem:[#allocation2 + $0x20] sm:$0xff]
        %v335 = vld [vmem:[#allocation2 + $0x28] sm:$0xff]
        %v336 = vld [vmem:[#allocation2 + $0x30] sm:$0xff]
        %v337 = vld [vmem:[#allocation2 + $0x38] sm:$0xff]
        %v338 = vld [vmem:[#allocation2 + $0x40] sm:$0xff]
        %v339 = vld [vmem:[#allocation2 + $0x48] sm:$0xff]
        %v340 = vld [vmem:[#allocation2 + $0x50] sm:$0xff]
        %v341 = vld [vmem:[#allocation2 + $0x58] sm:$0xff]
        %v342 = vld [vmem:[#allocation2 + $0x60] sm:$0xff]
        %v343 = vld [vmem:[#allocation2 + $0x68] sm:$0xff]
        %v344 = vld [vmem:[#allocation2 + $0x70] sm:$0xff]
        %v345 = vld [vmem:[#allocation2 + $0x78] sm:$0xff]
        %v346 = vld [vmem:[#allocation2 + $0x80] sm:$0xff]
        %v347 = vld [vmem:[#allocation2 + $0x88] sm:$0xff]
        %v348 = vld [vmem:[#allocation2 + $0x90] sm:$0xff]
        %v349 = vld [vmem:[#allocation2 + $0x98] sm:$0xff]
        %v350 = vld [vmem:[#allocation2 + $0xa0] sm:$0xff]
        %v351 = vld [vmem:[#allocation2 + $0xa8] sm:$0xff]
        %v352 = vld [vmem:[#allocation2 + $0xb0] sm:$0xff]
        %v353 = vld [vmem:[#allocation2 + $0xb8] sm:$0xff]
        %v354 = vld [vmem:[#allocation2 + $0xc0] sm:$0xff]
        %v355 = vld [vmem:[#allocation2 + $0xc8] sm:$0xff]
        %v356 = vld [vmem:[#allocation2 + $0xd0] sm:$0xff]
        %v357 = vld [vmem:[#allocation2 + $0xd8] sm:$0xff]
        %v358 = vld [vmem:[#allocation2 + $0xe0] sm:$0xff]
        %v359 = vld [vmem:[#allocation2 + $0xe8] sm:$0xff]
        %v360 = vld [vmem:[#allocation2 + $0xf0] sm:$0xff]
        %v361 = vld [vmem:[#allocation2 + $0xf8] sm:$0xff]
        %v362 = vld [vmem:[%s194] sm:$0xff]
        %v363 = vld [vmem:[%s194 + $0x8] sm:$0xff]
        %v364 = vld [vmem:[%s194 + $0x10] sm:$0xff]
        %v365 = vld [vmem:[%s194 + $0x18] sm:$0xff]
        %v366 = vld [vmem:[%s194 + $0x20] sm:$0xff]
        %v367 = vld [vmem:[%s194 + $0x28] sm:$0xff]
        %v368 = vld [vmem:[%s194 + $0x30] sm:$0xff]
        %v369 = vld [vmem:[%s194 + $0x38] sm:$0xff]
        %v370 = vld [vmem:[%s194 + $0x40] sm:$0xff]
        %v371 = vld [vmem:[%s194 + $0x48] sm:$0xff]
        %v372 = vld [vmem:[%s194 + $0x50] sm:$0xff]
        %v373 = vld [vmem:[%s194 + $0x58] sm:$0xff]
        %v374 = vld [vmem:[%s194 + $0x60] sm:$0xff]
        %v375 = vld [vmem:[%s194 + $0x68] sm:$0xff]
        %v376 = vld [vmem:[%s194 + $0x70] sm:$0xff]
        %v377 = vld [vmem:[%s194 + $0x78] sm:$0xff]
        %v378 = vld [vmem:[%s194 + $0x80] sm:$0xff]
        %v379 = vld [vmem:[%s194 + $0x88] sm:$0xff]
        %v380 = vld [vmem:[%s194 + $0x90] sm:$0xff]
        %v381 = vld [vmem:[%s194 + $0x98] sm:$0xff]
        %v382 = vld [vmem:[%s194 + $0xa0] sm:$0xff]
        %v383 = vld [vmem:[%s194 + $0xa8] sm:$0xff]
        %v384 = vld [vmem:[%s194 + $0xb0] sm:$0xff]
        %v385 = vld [vmem:[%s194 + $0xb8] sm:$0xff]
        %v386 = vld [vmem:[%s194 + $0xc0] sm:$0xff]
        %v387 = vld [vmem:[%s194 + $0xc8] sm:$0xff]
        %v388 = vld [vmem:[%s194 + $0xd0] sm:$0xff]
        %v389 = vld [vmem:[%s194 + $0xd8] sm:$0xff]
        %v390 = vld [vmem:[%s194 + $0xe0] sm:$0xff]
        %v391 = vld [vmem:[%s194 + $0xe8] sm:$0xff]
        %v392 = vld [vmem:[%s194 + $0xf0] sm:$0xff]
        %v393 = vld [vmem:[%s194 + $0xf8] sm:$0xff]
        %v394 = vld [vmem:[%s194 + $0x100] sm:$0xff]
        %v395 = vld [vmem:[%s194 + $0x108] sm:$0xff]
        %v396 = vld [vmem:[%s194 + $0x110] sm:$0xff]
        %v397 = vld [vmem:[%s194 + $0x118] sm:$0xff]
        %v398 = vld [vmem:[%s194 + $0x120] sm:$0xff]
        %v399 = vld [vmem:[%s194 + $0x128] sm:$0xff]
        %v400 = vld [vmem:[%s194 + $0x130] sm:$0xff]
        %v401 = vld [vmem:[%s194 + $0x138] sm:$0xff]
        %v402 = vld [vmem:[%s194 + $0x140] sm:$0xff]
        %v403 = vld [vmem:[%s194 + $0x148] sm:$0xff]
        %v404 = vld [vmem:[%s194 + $0x150] sm:$0xff]
        %v405 = vld [vmem:[%s194 + $0x158] sm:$0xff]
        %v406 = vld [vmem:[%s194 + $0x160] sm:$0xff]
        %v407 = vld [vmem:[%s194 + $0x168] sm:$0xff]
        %v408 = vld [vmem:[%s194 + $0x170] sm:$0xff]
        %v409 = vld [vmem:[%s194 + $0x178] sm:$0xff]
        %v410 = vld [vmem:[%s194 + $0x180] sm:$0xff]
        %v411 = vld [vmem:[%s194 + $0x188] sm:$0xff]
        %v412 = vld [vmem:[%s194 + $0x190] sm:$0xff]
        %v413 = vld [vmem:[%s194 + $0x198] sm:$0xff]
        %v414 = vld [vmem:[%s194 + $0x1a0] sm:$0xff]
        %v415 = vld [vmem:[%s194 + $0x1a8] sm:$0xff]
        %v416 = vld [vmem:[%s194 + $0x1b0] sm:$0xff]
        %v417 = vld [vmem:[%s194 + $0x1b8] sm:$0xff]
        %v418 = vld [vmem:[%s194 + $0x1c0] sm:$0xff]
        %v419 = vld [vmem:[%s194 + $0x1c8] sm:$0xff]
        %v420 = vld [vmem:[%s194 + $0x1d0] sm:$0xff]
        %v421 = vld [vmem:[%s194 + $0x1d8] sm:$0xff]
        %v422 = vld [vmem:[%s194 + $0x1e0] sm:$0xff]
        %v423 = vld [vmem:[%s194 + $0x1e8] sm:$0xff]
        %v424 = vld [vmem:[%s194 + $0x1f0] sm:$0xff]
        %v425 = vld [vmem:[%s194 + $0x1f8] sm:$0xff]
        %v490 = vunpack.c.l.b16 %v362
        %v491 = vunpack.c.h.b16 %v362
        %v492 = vunpack.c.l.b16 %v363
        %v493 = vunpack.c.h.b16 %v363
        %v494 = vunpack.c.l.b16 %v364
        %v495 = vunpack.c.h.b16 %v364
        %v496 = vunpack.c.l.b16 %v365
        %v497 = vunpack.c.h.b16 %v365
        %v498 = vunpack.c.l.b16 %v366
        %v499 = vunpack.c.h.b16 %v366
        %v500 = vunpack.c.l.b16 %v367
        %v501 = vunpack.c.h.b16 %v367
        %v502 = vunpack.c.l.b16 %v368
        %v503 = vunpack.c.h.b16 %v368
        %v504 = vunpack.c.l.b16 %v369
        %v505 = vunpack.c.h.b16 %v369
        %v506 = vunpack.c.l.b16 %v370
        %v507 = vunpack.c.h.b16 %v370
        %v508 = vunpack.c.l.b16 %v371
        %v509 = vunpack.c.h.b16 %v371
        %v510 = vunpack.c.l.b16 %v372
        %v511 = vunpack.c.h.b16 %v372
        %v512 = vunpack.c.l.b16 %v373
        %v513 = vunpack.c.h.b16 %v373
        %v514 = vunpack.c.l.b16 %v374
        %v515 = vunpack.c.h.b16 %v374
        %v516 = vunpack.c.l.b16 %v375
        %v517 = vunpack.c.h.b16 %v375
        %v518 = vunpack.c.l.b16 %v376
        %v519 = vunpack.c.h.b16 %v376
        %v520 = vunpack.c.l.b16 %v377
        %v521 = vunpack.c.h.b16 %v377
        %v522 = vunpack.c.l.b16 %v378
        %v523 = vunpack.c.h.b16 %v378
        %v524 = vunpack.c.l.b16 %v379
        %v525 = vunpack.c.h.b16 %v379
        %v526 = vunpack.c.l.b16 %v380
        %v527 = vunpack.c.h.b16 %v380
        %v528 = vunpack.c.l.b16 %v381
        %v529 = vunpack.c.h.b16 %v381
        %v530 = vunpack.c.l.b16 %v382
        %v531 = vunpack.c.h.b16 %v382
        %v532 = vunpack.c.l.b16 %v383
        %v533 = vunpack.c.h.b16 %v383
        %v534 = vunpack.c.l.b16 %v384
        %v535 = vunpack.c.h.b16 %v384
        %v536 = vunpack.c.l.b16 %v385
        %v537 = vunpack.c.h.b16 %v385
        %v538 = vunpack.c.l.b16 %v386
        %v539 = vunpack.c.h.b16 %v386
        %v540 = vunpack.c.l.b16 %v387
        %v541 = vunpack.c.h.b16 %v387
        %v542 = vunpack.c.l.b16 %v388
        %v543 = vunpack.c.h.b16 %v388
        %v544 = vunpack.c.l.b16 %v389
        %v545 = vunpack.c.h.b16 %v389
        %v546 = vunpack.c.l.b16 %v390
        %v547 = vunpack.c.h.b16 %v390
        %v548 = vunpack.c.l.b16 %v391
        %v549 = vunpack.c.h.b16 %v391
        %v550 = vunpack.c.l.b16 %v392
        %v551 = vunpack.c.h.b16 %v392
        %v552 = vunpack.c.l.b16 %v393
        %v553 = vunpack.c.h.b16 %v393
        %v554 = vunpack.c.l.b16 %v394
        %v555 = vunpack.c.h.b16 %v394
        %v556 = vunpack.c.l.b16 %v395
        %v557 = vunpack.c.h.b16 %v395
        %v558 = vunpack.c.l.b16 %v396
        %v559 = vunpack.c.h.b16 %v396
        %v560 = vunpack.c.l.b16 %v397
        %v561 = vunpack.c.h.b16 %v397
        %v562 = vunpack.c.l.b16 %v398
        %v563 = vunpack.c.h.b16 %v398
        %v564 = vunpack.c.l.b16 %v399
        %v565 = vunpack.c.h.b16 %v399
        %v566 = vunpack.c.l.b16 %v400
        %v567 = vunpack.c.h.b16 %v400
        %v568 = vunpack.c.l.b16 %v401
        %v569 = vunpack.c.h.b16 %v401
        %v570 = vunpack.c.l.b16 %v402
        %v571 = vunpack.c.h.b16 %v402
        %v572 = vunpack.c.l.b16 %v403
        %v573 = vunpack.c.h.b16 %v403
        %v574 = vunpack.c.l.b16 %v404
        %v575 = vunpack.c.h.b16 %v404
        %v576 = vunpack.c.l.b16 %v405
        %v577 = vunpack.c.h.b16 %v405
        %v578 = vunpack.c.l.b16 %v406
        %v579 = vunpack.c.h.b16 %v406
        %v580 = vunpack.c.l.b16 %v407
        %v581 = vunpack.c.h.b16 %v407
        %v582 = vunpack.c.l.b16 %v408
        %v583 = vunpack.c.h.b16 %v408
        %v584 = vunpack.c.l.b16 %v409
        %v585 = vunpack.c.h.b16 %v409
        %v586 = vunpack.c.l.b16 %v410
        %v587 = vunpack.c.h.b16 %v410
        %v588 = vunpack.c.l.b16 %v411
        %v589 = vunpack.c.h.b16 %v411
        %v590 = vunpack.c.l.b16 %v412
        %v591 = vunpack.c.h.b16 %v412
        %v592 = vunpack.c.l.b16 %v413
        %v593 = vunpack.c.h.b16 %v413
        %v594 = vunpack.c.l.b16 %v414
        %v595 = vunpack.c.h.b16 %v414
        %v596 = vunpack.c.l.b16 %v415
        %v597 = vunpack.c.h.b16 %v415
        %v598 = vunpack.c.l.b16 %v416
        %v599 = vunpack.c.h.b16 %v416
        %v600 = vunpack.c.l.b16 %v417
        %v601 = vunpack.c.h.b16 %v417
        %v602 = vunpack.c.l.b16 %v418
        %v603 = vunpack.c.h.b16 %v418
        %v604 = vunpack.c.l.b16 %v419
        %v605 = vunpack.c.h.b16 %v419
        %v606 = vunpack.c.l.b16 %v420
        %v607 = vunpack.c.h.b16 %v420
        %v608 = vunpack.c.l.b16 %v421
        %v609 = vunpack.c.h.b16 %v421
        %v610 = vunpack.c.l.b16 %v422
        %v611 = vunpack.c.h.b16 %v422
        %v612 = vunpack.c.l.b16 %v423
        %v613 = vunpack.c.h.b16 %v423
        %v614 = vunpack.c.l.b16 %v424
        %v615 = vunpack.c.h.b16 %v424
        %v616 = vunpack.c.l.b16 %v425
        %v617 = vunpack.c.h.b16 %v425
        %v618 = vpack.c.b16 %v494, %v490
        %v619 = vpack.c.b16 %v495, %v491
        %v620 = vpack.c.b16 %v496, %v492
        %v621 = vpack.c.b16 %v497, %v493
        %v622 = vpack.c.b16 %v502, %v498
        %v623 = vpack.c.b16 %v503, %v499
        %v624 = vpack.c.b16 %v504, %v500
        %v625 = vpack.c.b16 %v505, %v501
        %v626 = vpack.c.b16 %v510, %v506
        %v627 = vpack.c.b16 %v511, %v507
        %v628 = vpack.c.b16 %v512, %v508
        %v629 = vpack.c.b16 %v513, %v509
        %v630 = vpack.c.b16 %v518, %v514
        %v631 = vpack.c.b16 %v519, %v515
        %v632 = vpack.c.b16 %v520, %v516
        %v633 = vpack.c.b16 %v521, %v517
        %v634 = vpack.c.b16 %v526, %v522
        %v635 = vpack.c.b16 %v527, %v523
        %v636 = vpack.c.b16 %v528, %v524
        %v637 = vpack.c.b16 %v529, %v525
        %v638 = vpack.c.b16 %v534, %v530
        %v639 = vpack.c.b16 %v535, %v531
        %v640 = vpack.c.b16 %v536, %v532
        %v641 = vpack.c.b16 %v537, %v533
        %v642 = vpack.c.b16 %v542, %v538
        %v643 = vpack.c.b16 %v543, %v539
        %v644 = vpack.c.b16 %v544, %v540
        %v645 = vpack.c.b16 %v545, %v541
        %v646 = vpack.c.b16 %v550, %v546
        %v647 = vpack.c.b16 %v551, %v547
        %v648 = vpack.c.b16 %v552, %v548
        %v649 = vpack.c.b16 %v553, %v549
        %v650 = vpack.c.b16 %v558, %v554
        %v651 = vpack.c.b16 %v559, %v555
        %v652 = vpack.c.b16 %v560, %v556
        %v653 = vpack.c.b16 %v561, %v557
        %v654 = vpack.c.b16 %v566, %v562
        %v655 = vpack.c.b16 %v567, %v563
        %v656 = vpack.c.b16 %v568, %v564
        %v657 = vpack.c.b16 %v569, %v565
        %v658 = vpack.c.b16 %v574, %v570
        %v659 = vpack.c.b16 %v575, %v571
        %v660 = vpack.c.b16 %v576, %v572
        %v661 = vpack.c.b16 %v577, %v573
        %v662 = vpack.c.b16 %v582, %v578
        %v663 = vpack.c.b16 %v583, %v579
        %v664 = vpack.c.b16 %v584, %v580
        %v665 = vpack.c.b16 %v585, %v581
        %v666 = vpack.c.b16 %v590, %v586
        %v667 = vpack.c.b16 %v591, %v587
        %v668 = vpack.c.b16 %v592, %v588
        %v669 = vpack.c.b16 %v593, %v589
        %v670 = vpack.c.b16 %v598, %v594
        %v671 = vpack.c.b16 %v599, %v595
        %v672 = vpack.c.b16 %v600, %v596
        %v673 = vpack.c.b16 %v601, %v597
        %v674 = vpack.c.b16 %v606, %v602
        %v675 = vpack.c.b16 %v607, %v603
        %v676 = vpack.c.b16 %v608, %v604
        %v677 = vpack.c.b16 %v609, %v605
        %v678 = vpack.c.b16 %v614, %v610
        %v679 = vpack.c.b16 %v615, %v611
        %v680 = vpack.c.b16 %v616, %v612
        %v681 = vpack.c.b16 %v617, %v613
        %v810 = vunpack.c.l.b16 %v266
        %v811 = vunpack.c.l.b16 %v267
        %v812 = vunpack.c.l.b16 %v268
        %v813 = vunpack.c.l.b16 %v269
        %v814 = vunpack.c.l.b16 %v270
        %v815 = vunpack.c.l.b16 %v271
        %v816 = vunpack.c.l.b16 %v272
        %v817 = vunpack.c.l.b16 %v273
        %v818 = vunpack.c.l.b16 %v274
        %v819 = vunpack.c.l.b16 %v275
        %v820 = vunpack.c.l.b16 %v276
        %v821 = vunpack.c.l.b16 %v277
        %v822 = vunpack.c.l.b16 %v278
        %v823 = vunpack.c.l.b16 %v279
        %v824 = vunpack.c.l.b16 %v280
        %v825 = vunpack.c.l.b16 %v281
        %v826 = vunpack.c.l.b16 %v282
        %v827 = vunpack.c.l.b16 %v283
        %v828 = vunpack.c.l.b16 %v284
        %v829 = vunpack.c.l.b16 %v285
        %v830 = vunpack.c.l.b16 %v286
        %v831 = vunpack.c.l.b16 %v287
        %v832 = vunpack.c.l.b16 %v288
        %v833 = vunpack.c.l.b16 %v289
        %v834 = vunpack.c.l.b16 %v290
        %v835 = vunpack.c.l.b16 %v291
        %v836 = vunpack.c.l.b16 %v292
        %v837 = vunpack.c.l.b16 %v293
        %v838 = vunpack.c.l.b16 %v294
        %v839 = vunpack.c.l.b16 %v295
        %v840 = vunpack.c.l.b16 %v296
        %v841 = vunpack.c.l.b16 %v297
        %v842 = vunpack.c.l.b16 %v298
        %v843 = vunpack.c.l.b16 %v299
        %v844 = vunpack.c.l.b16 %v300
        %v845 = vunpack.c.l.b16 %v301
        %v846 = vunpack.c.l.b16 %v302
        %v847 = vunpack.c.l.b16 %v303
        %v848 = vunpack.c.l.b16 %v304
        %v849 = vunpack.c.l.b16 %v305
        %v850 = vunpack.c.l.b16 %v306
        %v851 = vunpack.c.l.b16 %v307
        %v852 = vunpack.c.l.b16 %v308
        %v853 = vunpack.c.l.b16 %v309
        %v854 = vunpack.c.l.b16 %v310
        %v855 = vunpack.c.l.b16 %v311
        %v856 = vunpack.c.l.b16 %v312
        %v857 = vunpack.c.l.b16 %v313
        %v858 = vunpack.c.l.b16 %v314
        %v859 = vunpack.c.l.b16 %v315
        %v860 = vunpack.c.l.b16 %v316
        %v861 = vunpack.c.l.b16 %v317
        %v862 = vunpack.c.l.b16 %v318
        %v863 = vunpack.c.l.b16 %v319
        %v864 = vunpack.c.l.b16 %v320
        %v865 = vunpack.c.l.b16 %v321
        %v866 = vunpack.c.l.b16 %v322
        %v867 = vunpack.c.l.b16 %v323
        %v868 = vunpack.c.l.b16 %v324
        %v869 = vunpack.c.l.b16 %v325
        %v870 = vunpack.c.l.b16 %v326
        %v871 = vunpack.c.l.b16 %v327
        %v872 = vunpack.c.l.b16 %v328
        %v873 = vunpack.c.l.b16 %v329
        %v874 = vpack.c.b16 %v811, %v810
        %v875 = vpack.c.b16 %v813, %v812
        %v876 = vpack.c.b16 %v815, %v814
        %v877 = vpack.c.b16 %v817, %v816
        %v878 = vpack.c.b16 %v819, %v818
        %v879 = vpack.c.b16 %v821, %v820
        %v880 = vpack.c.b16 %v823, %v822
        %v881 = vpack.c.b16 %v825, %v824
        %v882 = vpack.c.b16 %v827, %v826
        %v883 = vpack.c.b16 %v829, %v828
        %v884 = vpack.c.b16 %v831, %v830
        %v885 = vpack.c.b16 %v833, %v832
        %v886 = vpack.c.b16 %v835, %v834
        %v887 = vpack.c.b16 %v837, %v836
        %v888 = vpack.c.b16 %v839, %v838
        %v889 = vpack.c.b16 %v841, %v840
        %v890 = vpack.c.b16 %v843, %v842
        %v891 = vpack.c.b16 %v845, %v844
        %v892 = vpack.c.b16 %v847, %v846
        %v893 = vpack.c.b16 %v849, %v848
        %v894 = vpack.c.b16 %v851, %v850
        %v895 = vpack.c.b16 %v853, %v852
        %v896 = vpack.c.b16 %v855, %v854
        %v897 = vpack.c.b16 %v857, %v856
        %v898 = vpack.c.b16 %v859, %v858
        %v899 = vpack.c.b16 %v861, %v860
        %v900 = vpack.c.b16 %v863, %v862
        %v901 = vpack.c.b16 %v865, %v864
        %v902 = vpack.c.b16 %v867, %v866
        %v903 = vpack.c.b16 %v869, %v868
        %v904 = vpack.c.b16 %v871, %v870
        %v905 = vpack.c.b16 %v873, %v872
        %938 = vmatprep.subr.bf16.mxu0 0
        %939 = vmatpush1.bf16.msra.mxu0 %v874
        %940 = vmatprep.subr.bf16.mxu0 0
        %941 = vmatpush1.bf16.msra.mxu0 %v875
        %942 = vmatprep.subr.bf16.mxu0 0
        %943 = vmatpush1.bf16.msra.mxu0 %v876
        %944 = vmatprep.subr.bf16.mxu0 0
        %945 = vmatpush1.bf16.msra.mxu0 %v877
        %946 = vmatprep.subr.bf16.mxu0 0
        %947 = vmatpush1.bf16.msra.mxu0 %v878
        %948 = vmatprep.subr.bf16.mxu0 0
        %949 = vmatpush1.bf16.msra.mxu0 %v879
        %950 = vmatprep.subr.bf16.mxu0 0
        %951 = vmatpush1.bf16.msra.mxu0 %v880
        %952 = vmatprep.subr.bf16.mxu0 0
        %953 = vmatpush1.bf16.msra.mxu0 %v881
        %954 = vmatprep.subr.bf16.mxu0 0
        %955 = vmatpush1.bf16.msra.mxu0 %v882
        %956 = vmatprep.subr.bf16.mxu0 0
        %957 = vmatpush1.bf16.msra.mxu0 %v883
        %958 = vmatprep.subr.bf16.mxu0 0
        %959 = vmatpush1.bf16.msra.mxu0 %v884
        %960 = vmatprep.subr.bf16.mxu0 0
        %961 = vmatpush1.bf16.msra.mxu0 %v885
        %962 = vmatprep.subr.bf16.mxu0 0
        %963 = vmatpush1.bf16.msra.mxu0 %v886
        %964 = vmatprep.subr.bf16.mxu0 0
        %965 = vmatpush1.bf16.msra.mxu0 %v887
        %966 = vmatprep.subr.bf16.mxu0 0
        %967 = vmatpush1.bf16.msra.mxu0 %v888
        %968 = vmatprep.subr.bf16.mxu0 0
        %969 = vmatpush1.bf16.msra.mxu0 %v889
        %970 = vmatprep.mubr.bf16.mxu0 %v619
        %971 = vmatmul.mubr.bf16.gmra.mrb[0].mxu0 %v618
        %v972 = vpop.f32.mrb[0].mxu0
        %v973 = vadd.f32 0.0, %v972
        %v974 = vpop.f32.mrb[0].mxu0
        %v975 = vpop.f32.mrb[0].mxu0
        %v976 = vadd.f32 0.0, %v975
        %v977 = vpop.f32.mrb[0].mxu0
        %978 = vmatprep.mubr.bf16.mxu0 %v623
        %979 = vmatmul.mubr.bf16.gmra.mrb[0].mxu0 %v622
        %v980 = vpop.f32.mrb[0].mxu0
        %v981 = vadd.f32 0.0, %v980
        %v982 = vpop.f32.mrb[0].mxu0
        %v983 = vpop.f32.mrb[0].mxu0
        %v984 = vadd.f32 0.0, %v983
        %v985 = vpop.f32.mrb[0].mxu0
        %986 = vmatprep.mubr.bf16.mxu0 %v627
        %987 = vmatmul.mubr.bf16.gmra.mrb[0].mxu0 %v626
        %v988 = vpop.f32.mrb[0].mxu0
        %v989 = vadd.f32 0.0, %v988
        %v990 = vpop.f32.mrb[0].mxu0
        %v991 = vpop.f32.mrb[0].mxu0
        %v992 = vadd.f32 0.0, %v991
        %v993 = vpop.f32.mrb[0].mxu0
        %994 = vmatprep.mubr.bf16.mxu0 %v631
        %995 = vmatmul.mubr.bf16.gmra.mrb[0].mxu0 %v630
        %v996 = vpop.f32.mrb[0].mxu0
        %v997 = vadd.f32 0.0, %v996
        %v998 = vpop.f32.mrb[0].mxu0
        %v999 = vpop.f32.mrb[0].mxu0
        %v1000 = vadd.f32 0.0, %v999
        %v1001 = vpop.f32.mrb[0].mxu0
        %1002 = vmatprep.mubr.bf16.mxu0 %v635
        %1003 = vmatmul.mubr.bf16.gmra.mrb[0].mxu0 %v634
        %v1004 = vpop.f32.mrb[0].mxu0
        %v1005 = vadd.f32 0.0, %v1004
        %v1006 = vpop.f32.mrb[0].mxu0
        %v1007 = vpop.f32.mrb[0].mxu0
        %v1008 = vadd.f32 0.0, %v1007
        %v1009 = vpop.f32.mrb[0].mxu0
        %1010 = vmatprep.mubr.bf16.mxu0 %v639
        %1011 = vmatmul.mubr.bf16.gmra.mrb[0].mxu0 %v638
        %v1012 = vpop.f32.mrb[0].mxu0
        %v1013 = vadd.f32 0.0, %v1012
        %v1014 = vpop.f32.mrb[0].mxu0
        %v1015 = vpop.f32.mrb[0].mxu0
        %v1016 = vadd.f32 0.0, %v1015
        %v1017 = vpop.f32.mrb[0].mxu0
        %1018 = vmatprep.mubr.bf16.mxu0 %v643
        %1019 = vmatmul.mubr.bf16.gmra.mrb[0].mxu0 %v642
        %v1020 = vpop.f32.mrb[0].mxu0
        %v1021 = vadd.f32 0.0, %v1020
        %v1022 = vpop.f32.mrb[0].mxu0
        %v1023 = vpop.f32.mrb[0].mxu0
        %v1024 = vadd.f32 0.0, %v1023
        %v1025 = vpop.f32.mrb[0].mxu0
        %1026 = vmatprep.mubr.bf16.mxu0 %v647
        %1027 = vmatmul.mubr.bf16.gmra.mrb[0].mxu0 %v646
        %v1028 = vpop.f32.mrb[0].mxu0
        %v1029 = vadd.f32 0.0, %v1028
        %v1030 = vpop.f32.mrb[0].mxu0
        %v1031 = vpop.f32.mrb[0].mxu0
        %v1032 = vadd.f32 0.0, %v1031
        %v1033 = vpop.f32.mrb[0].mxu0
        %1034 = vmatprep.mubr.bf16.mxu0 %v651
        %1035 = vmatmul.mubr.bf16.gmra.mrb[0].mxu0 %v650
        %v1036 = vpop.f32.mrb[0].mxu0
        %v1037 = vadd.f32 0.0, %v1036
        %v1038 = vpop.f32.mrb[0].mxu0
        %v1039 = vpop.f32.mrb[0].mxu0
        %v1040 = vadd.f32 0.0, %v1039
        %v1041 = vpop.f32.mrb[0].mxu0
        %1042 = vmatprep.mubr.bf16.mxu0 %v655
        %1043 = vmatmul.mubr.bf16.gmra.mrb[0].mxu0 %v654
        %v1044 = vpop.f32.mrb[0].mxu0
        %v1045 = vadd.f32 0.0, %v1044
        %v1046 = vpop.f32.mrb[0].mxu0
        %v1047 = vpop.f32.mrb[0].mxu0
        %v1048 = vadd.f32 0.0, %v1047
        %v1049 = vpop.f32.mrb[0].mxu0
        %1050 = vmatprep.mubr.bf16.mxu0 %v659
        %1051 = vmatmul.mubr.bf16.gmra.mrb[0].mxu0 %v658
        %v1052 = vpop.f32.mrb[0].mxu0
        %v1053 = vadd.f32 0.0, %v1052
        %v1054 = vpop.f32.mrb[0].mxu0
        %v1055 = vpop.f32.mrb[0].mxu0
        %v1056 = vadd.f32 0.0, %v1055
        %v1057 = vpop.f32.mrb[0].mxu0
        %1058 = vmatprep.mubr.bf16.mxu0 %v663
        %1059 = vmatmul.mubr.bf16.gmra.mrb[0].mxu0 %v662
        %v1060 = vpop.f32.mrb[0].mxu0
        %v1061 = vadd.f32 0.0, %v1060
        %v1062 = vpop.f32.mrb[0].mxu0
        %v1063 = vpop.f32.mrb[0].mxu0
        %v1064 = vadd.f32 0.0, %v1063
        %v1065 = vpop.f32.mrb[0].mxu0
        %1066 = vmatprep.mubr.bf16.mxu0 %v667
        %1067 = vmatmul.mubr.bf16.gmra.mrb[0].mxu0 %v666
        %v1068 = vpop.f32.mrb[0].mxu0
        %v1069 = vadd.f32 0.0, %v1068
        %v1070 = vpop.f32.mrb[0].mxu0
        %v1071 = vpop.f32.mrb[0].mxu0
        %v1072 = vadd.f32 0.0, %v1071
        %v1073 = vpop.f32.mrb[0].mxu0
        %1074 = vmatprep.mubr.bf16.mxu0 %v671
        %1075 = vmatmul.mubr.bf16.gmra.mrb[0].mxu0 %v670
        %v1076 = vpop.f32.mrb[0].mxu0
        %v1077 = vadd.f32 0.0, %v1076
        %v1078 = vpop.f32.mrb[0].mxu0
        %v1079 = vpop.f32.mrb[0].mxu0
        %v1080 = vadd.f32 0.0, %v1079
        %v1081 = vpop.f32.mrb[0].mxu0
        %1082 = vmatprep.mubr.bf16.mxu0 %v675
        %1083 = vmatmul.mubr.bf16.gmra.mrb[0].mxu0 %v674
        %v1084 = vpop.f32.mrb[0].mxu0
        %v1085 = vadd.f32 0.0, %v1084
        %v1086 = vpop.f32.mrb[0].mxu0
        %v1087 = vpop.f32.mrb[0].mxu0
        %v1088 = vadd.f32 0.0, %v1087
        %v1089 = vpop.f32.mrb[0].mxu0
        %1090 = vmatprep.mubr.bf16.mxu0 %v679
        %1091 = vmatmul.mubr.bf16.gmra.mrb[0].mxu0 %v678
        %v1092 = vpop.f32.mrb[0].mxu0
        %v1093 = vadd.f32 0.0, %v1092
        %v1094 = vpop.f32.mrb[0].mxu0
        %v1095 = vpop.f32.mrb[0].mxu0
        %v1096 = vadd.f32 0.0, %v1095
        %v1097 = vpop.f32.mrb[0].mxu0
        %1098 = vdwg.mxu0
        %1099 = vmatprep.subr.bf16.mxu0 0
        %1100 = vmatpush1.bf16.msra.mxu0 %v890
        %1101 = vmatprep.subr.bf16.mxu0 0
        %1102 = vmatpush1.bf16.msra.mxu0 %v891
        %1103 = vmatprep.subr.bf16.mxu0 0
        %1104 = vmatpush1.bf16.msra.mxu0 %v892
        %1105 = vmatprep.subr.bf16.mxu0 0
        %1106 = vmatpush1.bf16.msra.mxu0 %v893
        %1107 = vmatprep.subr.bf16.mxu0 0
        %1108 = vmatpush1.bf16.msra.mxu0 %v894
        %1109 = vmatprep.subr.bf16.mxu0 0
        %1110 = vmatpush1.bf16.msra.mxu0 %v895
        %1111 = vmatprep.subr.bf16.mxu0 0
        %1112 = vmatpush1.bf16.msra.mxu0 %v896
        %1113 = vmatprep.subr.bf16.mxu0 0
        %1114 = vmatpush1.bf16.msra.mxu0 %v897
        %1115 = vmatprep.subr.bf16.mxu0 0
        %1116 = vmatpush1.bf16.msra.mxu0 %v898
        %1117 = vmatprep.subr.bf16.mxu0 0
        %1118 = vmatpush1.bf16.msra.mxu0 %v899
        %1119 = vmatprep.subr.bf16.mxu0 0
        %1120 = vmatpush1.bf16.msra.mxu0 %v900
        %1121 = vmatprep.subr.bf16.mxu0 0
        %1122 = vmatpush1.bf16.msra.mxu0 %v901
        %1123 = vmatprep.subr.bf16.mxu0 0
        %1124 = vmatpush1.bf16.msra.mxu0 %v902
        %1125 = vmatprep.subr.bf16.mxu0 0
        %1126 = vmatpush1.bf16.msra.mxu0 %v903
        %1127 = vmatprep.subr.bf16.mxu0 0
        %1128 = vmatpush1.bf16.msra.mxu0 %v904
        %1129 = vmatprep.subr.bf16.mxu0 0
        %1130 = vmatpush1.bf16.msra.mxu0 %v905
        %1131 = vmatprep.mubr.bf16.mxu0 %v621
        %1132 = vmatmul.mubr.bf16.gmra.mrb[0].mxu0 %v620
        %v1133 = vpop.f32.mrb[0].mxu0
        %v1134 = vadd.f32 %v973, %v1133
        %v1135 = vpop.f32.mrb[0].mxu0
        %v1136 = vpop.f32.mrb[0].mxu0
        %v1137 = vadd.f32 %v976, %v1136
        %v1138 = vpop.f32.mrb[0].mxu0
        %1139 = vmatprep.mubr.bf16.mxu0 %v625
        %1140 = vmatmul.mubr.bf16.gmra.mrb[0].mxu0 %v624
        %v1141 = vpop.f32.mrb[0].mxu0
        %v1142 = vadd.f32 %v981, %v1141
        %v1143 = vpop.f32.mrb[0].mxu0
        %v1144 = vpop.f32.mrb[0].mxu0
        %v1145 = vadd.f32 %v984, %v1144
        %v1146 = vpop.f32.mrb[0].mxu0
        %1147 = vmatprep.mubr.bf16.mxu0 %v629
        %1148 = vmatmul.mubr.bf16.gmra.mrb[0].mxu0 %v628
        %v1149 = vpop.f32.mrb[0].mxu0
        %v1150 = vadd.f32 %v989, %v1149
        %v1151 = vpop.f32.mrb[0].mxu0
        %v1152 = vpop.f32.mrb[0].mxu0
        %v1153 = vadd.f32 %v992, %v1152
        %v1154 = vpop.f32.mrb[0].mxu0
        %1155 = vmatprep.mubr.bf16.mxu0 %v633
        %1156 = vmatmul.mubr.bf16.gmra.mrb[0].mxu0 %v632
        %v1157 = vpop.f32.mrb[0].mxu0
        %v1158 = vadd.f32 %v997, %v1157
        %v1159 = vpop.f32.mrb[0].mxu0
        %v1160 = vpop.f32.mrb[0].mxu0
        %v1161 = vadd.f32 %v1000, %v1160
        %v1162 = vpop.f32.mrb[0].mxu0
        %1163 = vmatprep.mubr.bf16.mxu0 %v637
        %1164 = vmatmul.mubr.bf16.gmra.mrb[0].mxu0 %v636
        %v1165 = vpop.f32.mrb[0].mxu0
        %v1166 = vadd.f32 %v1005, %v1165
        %v1167 = vpop.f32.mrb[0].mxu0
        %v1168 = vpop.f32.mrb[0].mxu0
        %v1169 = vadd.f32 %v1008, %v1168
        %v1170 = vpop.f32.mrb[0].mxu0
        %1171 = vmatprep.mubr.bf16.mxu0 %v641
        %1172 = vmatmul.mubr.bf16.gmra.mrb[0].mxu0 %v640
        %v1173 = vpop.f32.mrb[0].mxu0
        %v1174 = vadd.f32 %v1013, %v1173
        %v1175 = vpop.f32.mrb[0].mxu0
        %v1176 = vpop.f32.mrb[0].mxu0
        %v1177 = vadd.f32 %v1016, %v1176
        %v1178 = vpop.f32.mrb[0].mxu0
        %1179 = vmatprep.mubr.bf16.mxu0 %v645
        %1180 = vmatmul.mubr.bf16.gmra.mrb[0].mxu0 %v644
        %v1181 = vpop.f32.mrb[0].mxu0
        %v1182 = vadd.f32 %v1021, %v1181
        %v1183 = vpop.f32.mrb[0].mxu0
        %v1184 = vpop.f32.mrb[0].mxu0
        %v1185 = vadd.f32 %v1024, %v1184
        %v1186 = vpop.f32.mrb[0].mxu0
        %1187 = vmatprep.mubr.bf16.mxu0 %v649
        %1188 = vmatmul.mubr.bf16.gmra.mrb[0].mxu0 %v648
        %v1189 = vpop.f32.mrb[0].mxu0
        %v1190 = vadd.f32 %v1029, %v1189
        %v1191 = vpop.f32.mrb[0].mxu0
        %v1192 = vpop.f32.mrb[0].mxu0
        %v1193 = vadd.f32 %v1032, %v1192
        %v1194 = vpop.f32.mrb[0].mxu0
        %1195 = vmatprep.mubr.bf16.mxu0 %v653
        %1196 = vmatmul.mubr.bf16.gmra.mrb[0].mxu0 %v652
        %v1197 = vpop.f32.mrb[0].mxu0
        %v1198 = vadd.f32 %v1037, %v1197
        %v1199 = vpop.f32.mrb[0].mxu0
        %v1200 = vpop.f32.mrb[0].mxu0
        %v1201 = vadd.f32 %v1040, %v1200
        %v1202 = vpop.f32.mrb[0].mxu0
        %1203 = vmatprep.mubr.bf16.mxu0 %v657
        %1204 = vmatmul.mubr.bf16.gmra.mrb[0].mxu0 %v656
        %v1205 = vpop.f32.mrb[0].mxu0
        %v1206 = vadd.f32 %v1045, %v1205
        %v1207 = vpop.f32.mrb[0].mxu0
        %v1208 = vpop.f32.mrb[0].mxu0
        %v1209 = vadd.f32 %v1048, %v1208
        %v1210 = vpop.f32.mrb[0].mxu0
        %1211 = vmatprep.mubr.bf16.mxu0 %v661
        %1212 = vmatmul.mubr.bf16.gmra.mrb[0].mxu0 %v660
        %v1213 = vpop.f32.mrb[0].mxu0
        %v1214 = vadd.f32 %v1053, %v1213
        %v1215 = vpop.f32.mrb[0].mxu0
        %v1216 = vpop.f32.mrb[0].mxu0
        %v1217 = vadd.f32 %v1056, %v1216
        %v1218 = vpop.f32.mrb[0].mxu0
        %1219 = vmatprep.mubr.bf16.mxu0 %v665
        %1220 = vmatmul.mubr.bf16.gmra.mrb[0].mxu0 %v664
        %v1221 = vpop.f32.mrb[0].mxu0
        %v1222 = vadd.f32 %v1061, %v1221
        %v1223 = vpop.f32.mrb[0].mxu0
        %v1224 = vpop.f32.mrb[0].mxu0
        %v1225 = vadd.f32 %v1064, %v1224
        %v1226 = vpop.f32.mrb[0].mxu0
        %1227 = vmatprep.mubr.bf16.mxu0 %v669
        %1228 = vmatmul.mubr.bf16.gmra.mrb[0].mxu0 %v668
        %v1229 = vpop.f32.mrb[0].mxu0
        %v1230 = vadd.f32 %v1069, %v1229
        %v1231 = vpop.f32.mrb[0].mxu0
        %v1232 = vpop.f32.mrb[0].mxu0
        %v1233 = vadd.f32 %v1072, %v1232
        %v1234 = vpop.f32.mrb[0].mxu0
        %1235 = vmatprep.mubr.bf16.mxu0 %v673
        %1236 = vmatmul.mubr.bf16.gmra.mrb[0].mxu0 %v672
        %v1237 = vpop.f32.mrb[0].mxu0
        %v1238 = vadd.f32 %v1077, %v1237
        %v1239 = vpop.f32.mrb[0].mxu0
        %v1240 = vpop.f32.mrb[0].mxu0
        %v1241 = vadd.f32 %v1080, %v1240
        %v1242 = vpop.f32.mrb[0].mxu0
        %1243 = vmatprep.mubr.bf16.mxu0 %v677
        %1244 = vmatmul.mubr.bf16.gmra.mrb[0].mxu0 %v676
        %v1245 = vpop.f32.mrb[0].mxu0
        %v1246 = vadd.f32 %v1085, %v1245
        %v1247 = vpop.f32.mrb[0].mxu0
        %v1248 = vpop.f32.mrb[0].mxu0
        %v1249 = vadd.f32 %v1088, %v1248
        %v1250 = vpop.f32.mrb[0].mxu0
        %1251 = vmatprep.mubr.bf16.mxu0 %v681
        %1252 = vmatmul.mubr.bf16.gmra.mrb[0].mxu0 %v680
        %v1253 = vpop.f32.mrb[0].mxu0
        %v1254 = vadd.f32 %v1093, %v1253
        %v1255 = vpop.f32.mrb[0].mxu0
        %v1256 = vpop.f32.mrb[0].mxu0
        %v1257 = vadd.f32 %v1096, %v1256
        %v1258 = vpop.f32.mrb[0].mxu0
        %1259 = vdwg.mxu0
        %v1260 = vadd.f32 %v330, %v1134
        %v1261 = vadd.f32 %v331, %v1137
        %v1262 = vadd.f32 %v332, %v1142
        %v1263 = vadd.f32 %v333, %v1145
        %v1264 = vadd.f32 %v334, %v1150
        %v1265 = vadd.f32 %v335, %v1153
        %v1266 = vadd.f32 %v336, %v1158
        %v1267 = vadd.f32 %v337, %v1161
        %v1268 = vadd.f32 %v338, %v1166
        %v1269 = vadd.f32 %v339, %v1169
        %v1270 = vadd.f32 %v340, %v1174
        %v1271 = vadd.f32 %v341, %v1177
        %v1272 = vadd.f32 %v342, %v1182
        %v1273 = vadd.f32 %v343, %v1185
        %v1274 = vadd.f32 %v344, %v1190
        %v1275 = vadd.f32 %v345, %v1193
        %v1276 = vadd.f32 %v346, %v1198
        %v1277 = vadd.f32 %v347, %v1201
        %v1278 = vadd.f32 %v348, %v1206
        %v1279 = vadd.f32 %v349, %v1209
        %v1280 = vadd.f32 %v350, %v1214
        %v1281 = vadd.f32 %v351, %v1217
        %v1282 = vadd.f32 %v352, %v1222
        %v1283 = vadd.f32 %v353, %v1225
        %v1284 = vadd.f32 %v354, %v1230
        %v1285 = vadd.f32 %v355, %v1233
        %v1286 = vadd.f32 %v356, %v1238
        %v1287 = vadd.f32 %v357, %v1241
        %v1288 = vadd.f32 %v358, %v1246
        %v1289 = vadd.f32 %v359, %v1249
        %v1290 = vadd.f32 %v360, %v1254
        %v1291 = vadd.f32 %v361, %v1257
        %1292 = vst [vmem:[#allocation2] sm:$0xff] %v1260
        %1293 = vst [vmem:[#allocation2 + $0x8] sm:$0xff] %v1261
        %1294 = vst [vmem:[#allocation2 + $0x10] sm:$0xff] %v1262
        %1295 = vst [vmem:[#allocation2 + $0x18] sm:$0xff] %v1263
        %1296 = vst [vmem:[#allocation2 + $0x20] sm:$0xff] %v1264
        %1297 = vst [vmem:[#allocation2 + $0x28] sm:$0xff] %v1265
        %1298 = vst [vmem:[#allocation2 + $0x30] sm:$0xff] %v1266
        %1299 = vst [vmem:[#allocation2 + $0x38] sm:$0xff] %v1267
        %1300 = vst [vmem:[#allocation2 + $0x40] sm:$0xff] %v1268
        %1301 = vst [vmem:[#allocation2 + $0x48] sm:$0xff] %v1269
        %1302 = vst [vmem:[#allocation2 + $0x50] sm:$0xff] %v1270
        %1303 = vst [vmem:[#allocation2 + $0x58] sm:$0xff] %v1271
        %1304 = vst [vmem:[#allocation2 + $0x60] sm:$0xff] %v1272
        %1305 = vst [vmem:[#allocation2 + $0x68] sm:$0xff] %v1273
        %1306 = vst [vmem:[#allocation2 + $0x70] sm:$0xff] %v1274
        %1307 = vst [vmem:[#allocation2 + $0x78] sm:$0xff] %v1275
        %1308 = vst [vmem:[#allocation2 + $0x80] sm:$0xff] %v1276
        %1309 = vst [vmem:[#allocation2 + $0x88] sm:$0xff] %v1277
        %1310 = vst [vmem:[#allocation2 + $0x90] sm:$0xff] %v1278
        %1311 = vst [vmem:[#allocation2 + $0x98] sm:$0xff] %v1279
        %1312 = vst [vmem:[#allocation2 + $0xa0] sm:$0xff] %v1280
        %1313 = vst [vmem:[#allocation2 + $0xa8] sm:$0xff] %v1281
        %1314 = vst [vmem:[#allocation2 + $0xb0] sm:$0xff] %v1282
        %1315 = vst [vmem:[#allocation2 + $0xb8] sm:$0xff] %v1283
        %1316 = vst [vmem:[#allocation2 + $0xc0] sm:$0xff] %v1284
        %1317 = vst [vmem:[#allocation2 + $0xc8] sm:$0xff] %v1285
        %1318 = vst [vmem:[#allocation2 + $0xd0] sm:$0xff] %v1286
        %1319 = vst [vmem:[#allocation2 + $0xd8] sm:$0xff] %v1287
        %1320 = vst [vmem:[#allocation2 + $0xe0] sm:$0xff] %v1288
        %1321 = vst [vmem:[#allocation2 + $0xe8] sm:$0xff] %v1289
        %1322 = vst [vmem:[#allocation2 + $0xf0] sm:$0xff] %v1290
        %1323 = vst [vmem:[#allocation2 + $0xf8] sm:$0xff] %v1291
        // Predicated region
        $region45: #{tpu_custom_call.1} parent=31 // pred_check
          %p1324 = pneg %p225
        $region46: #{tpu_custom_call.1} parent=31 // pred_check_branch
          %1326 = sbr.rel (%p1324) target = $region48
        $region47: #{tpu_custom_call.1} parent=31 // pred_region
          %v1327 = vld [vmem:[#allocation2] sm:$0xff]
          %v1328 = vld [vmem:[#allocation2 + $0x8] sm:$0xff]
          %v1329 = vld [vmem:[#allocation2 + $0x10] sm:$0xff]
          %v1330 = vld [vmem:[#allocation2 + $0x18] sm:$0xff]
          %v1331 = vld [vmem:[#allocation2 + $0x20] sm:$0xff]
          %v1332 = vld [vmem:[#allocation2 + $0x28] sm:$0xff]
          %v1333 = vld [vmem:[#allocation2 + $0x30] sm:$0xff]
          %v1334 = vld [vmem:[#allocation2 + $0x38] sm:$0xff]
          %v1335 = vld [vmem:[#allocation2 + $0x40] sm:$0xff]
          %v1336 = vld [vmem:[#allocation2 + $0x48] sm:$0xff]
          %v1337 = vld [vmem:[#allocation2 + $0x50] sm:$0xff]
          %v1338 = vld [vmem:[#allocation2 + $0x58] sm:$0xff]
          %v1339 = vld [vmem:[#allocation2 + $0x60] sm:$0xff]
          %v1340 = vld [vmem:[#allocation2 + $0x68] sm:$0xff]
          %v1341 = vld [vmem:[#allocation2 + $0x70] sm:$0xff]
          %v1342 = vld [vmem:[#allocation2 + $0x78] sm:$0xff]
          %v1343 = vld [vmem:[#allocation2 + $0x80] sm:$0xff]
          %v1344 = vld [vmem:[#allocation2 + $0x88] sm:$0xff]
          %v1345 = vld [vmem:[#allocation2 + $0x90] sm:$0xff]
          %v1346 = vld [vmem:[#allocation2 + $0x98] sm:$0xff]
          %v1347 = vld [vmem:[#allocation2 + $0xa0] sm:$0xff]
          %v1348 = vld [vmem:[#allocation2 + $0xa8] sm:$0xff]
          %v1349 = vld [vmem:[#allocation2 + $0xb0] sm:$0xff]
          %v1350 = vld [vmem:[#allocation2 + $0xb8] sm:$0xff]
          %v1351 = vld [vmem:[#allocation2 + $0xc0] sm:$0xff]
          %v1352 = vld [vmem:[#allocation2 + $0xc8] sm:$0xff]
          %v1353 = vld [vmem:[#allocation2 + $0xd0] sm:$0xff]
          %v1354 = vld [vmem:[#allocation2 + $0xd8] sm:$0xff]
          %v1355 = vld [vmem:[#allocation2 + $0xe0] sm:$0xff]
          %v1356 = vld [vmem:[#allocation2 + $0xe8] sm:$0xff]
          %v1357 = vld [vmem:[#allocation2 + $0xf0] sm:$0xff]
          %v1358 = vld [vmem:[#allocation2 + $0xf8] sm:$0xff]
          %v1359 = vld [vmem:[%s2] sm:$0x1]
          %v1361 = vlaneseq
          %v1362 = vshrl.u32 %v1361, 7
          %v1363 = vsub.s32 0, %v1362
          %v1364 = vrot.slane %v1359, %v1363
          %v1366 = vadd.f32 %v1327, %v1364
          %v1367 = vadd.f32 %v1328, %v1364
          %v1368 = vadd.f32 %v1329, %v1364
          %v1369 = vadd.f32 %v1330, %v1364
          %v1370 = vadd.f32 %v1331, %v1364
          %v1371 = vadd.f32 %v1332, %v1364
          %v1372 = vadd.f32 %v1333, %v1364
          %v1373 = vadd.f32 %v1334, %v1364
          %v1374 = vadd.f32 %v1335, %v1364
          %v1375 = vadd.f32 %v1336, %v1364
          %v1376 = vadd.f32 %v1337, %v1364
          %v1377 = vadd.f32 %v1338, %v1364
          %v1378 = vadd.f32 %v1339, %v1364
          %v1379 = vadd.f32 %v1340, %v1364
          %v1380 = vadd.f32 %v1341, %v1364
          %v1381 = vadd.f32 %v1342, %v1364
          %v1382 = vadd.f32 %v1343, %v1364
          %v1383 = vadd.f32 %v1344, %v1364
          %v1384 = vadd.f32 %v1345, %v1364
          %v1385 = vadd.f32 %v1346, %v1364
          %v1386 = vadd.f32 %v1347, %v1364
          %v1387 = vadd.f32 %v1348, %v1364
          %v1388 = vadd.f32 %v1349, %v1364
          %v1389 = vadd.f32 %v1350, %v1364
          %v1390 = vadd.f32 %v1351, %v1364
          %v1391 = vadd.f32 %v1352, %v1364
          %v1392 = vadd.f32 %v1353, %v1364
          %v1393 = vadd.f32 %v1354, %v1364
          %v1394 = vadd.f32 %v1355, %v1364
          %v1395 = vadd.f32 %v1356, %v1364
          %v1396 = vadd.f32 %v1357, %v1364
          %v1397 = vadd.f32 %v1358, %v1364
          %v1398 = vmax.f32 %v1366, 0.0
          %v1399 = vmax.f32 %v1367, 0.0
          %v1400 = vmax.f32 %v1368, 0.0
          %v1401 = vmax.f32 %v1369, 0.0
          %v1402 = vmax.f32 %v1370, 0.0
          %v1403 = vmax.f32 %v1371, 0.0
          %v1404 = vmax.f32 %v1372, 0.0
          %v1405 = vmax.f32 %v1373, 0.0
          %v1406 = vmax.f32 %v1374, 0.0
          %v1407 = vmax.f32 %v1375, 0.0
          %v1408 = vmax.f32 %v1376, 0.0
          %v1409 = vmax.f32 %v1377, 0.0
          %v1410 = vmax.f32 %v1378, 0.0
          %v1411 = vmax.f32 %v1379, 0.0
          %v1412 = vmax.f32 %v1380, 0.0
          %v1413 = vmax.f32 %v1381, 0.0
          %v1414 = vmax.f32 %v1382, 0.0
          %v1415 = vmax.f32 %v1383, 0.0
          %v1416 = vmax.f32 %v1384, 0.0
          %v1417 = vmax.f32 %v1385, 0.0
          %v1418 = vmax.f32 %v1386, 0.0
          %v1419 = vmax.f32 %v1387, 0.0
          %v1420 = vmax.f32 %v1388, 0.0
          %v1421 = vmax.f32 %v1389, 0.0
          %v1422 = vmax.f32 %v1390, 0.0
          %v1423 = vmax.f32 %v1391, 0.0
          %v1424 = vmax.f32 %v1392, 0.0
          %v1425 = vmax.f32 %v1393, 0.0
          %v1426 = vmax.f32 %v1394, 0.0
          %v1427 = vmax.f32 %v1395, 0.0
          %v1428 = vmax.f32 %v1396, 0.0
          %v1429 = vmax.f32 %v1397, 0.0
          %v1430 = vpack.c.bf16 %v1399, %v1398
          %v1431 = vpack.c.bf16 %v1401, %v1400
          %v1432 = vpack.c.bf16 %v1403, %v1402
          %v1433 = vpack.c.bf16 %v1405, %v1404
          %v1434 = vpack.c.bf16 %v1407, %v1406
          %v1435 = vpack.c.bf16 %v1409, %v1408
          %v1436 = vpack.c.bf16 %v1411, %v1410
          %v1437 = vpack.c.bf16 %v1413, %v1412
          %v1438 = vpack.c.bf16 %v1415, %v1414
          %v1439 = vpack.c.bf16 %v1417, %v1416
          %v1440 = vpack.c.bf16 %v1419, %v1418
          %v1441 = vpack.c.bf16 %v1421, %v1420
          %v1442 = vpack.c.bf16 %v1423, %v1422
          %v1443 = vpack.c.bf16 %v1425, %v1424
          %v1444 = vpack.c.bf16 %v1427, %v1426
          %v1445 = vpack.c.bf16 %v1429, %v1428
          %v1462 = vunpack.c.l.b16 %v1430
          %v1463 = vunpack.c.h.b16 %v1430
          %v1464 = vunpack.c.l.b16 %v1431
          %v1465 = vunpack.c.h.b16 %v1431
          %v1466 = vunpack.c.l.b16 %v1432
          %v1467 = vunpack.c.h.b16 %v1432
          %v1468 = vunpack.c.l.b16 %v1433
          %v1469 = vunpack.c.h.b16 %v1433
          %v1470 = vunpack.c.l.b16 %v1434
          %v1471 = vunpack.c.h.b16 %v1434
          %v1472 = vunpack.c.l.b16 %v1435
          %v1473 = vunpack.c.h.b16 %v1435
          %v1474 = vunpack.c.l.b16 %v1436
          %v1475 = vunpack.c.h.b16 %v1436
          %v1476 = vunpack.c.l.b16 %v1437
          %v1477 = vunpack.c.h.b16 %v1437
          %v1478 = vunpack.c.l.b16 %v1438
          %v1479 = vunpack.c.h.b16 %v1438
          %v1480 = vunpack.c.l.b16 %v1439
          %v1481 = vunpack.c.h.b16 %v1439
          %v1482 = vunpack.c.l.b16 %v1440
          %v1483 = vunpack.c.h.b16 %v1440
          %v1484 = vunpack.c.l.b16 %v1441
          %v1485 = vunpack.c.h.b16 %v1441
          %v1486 = vunpack.c.l.b16 %v1442
          %v1487 = vunpack.c.h.b16 %v1442
          %v1488 = vunpack.c.l.b16 %v1443
          %v1489 = vunpack.c.h.b16 %v1443
          %v1490 = vunpack.c.l.b16 %v1444
          %v1491 = vunpack.c.h.b16 %v1444
          %v1492 = vunpack.c.l.b16 %v1445
          %v1493 = vunpack.c.h.b16 %v1445
          %v1494 = vpack.c.b16 %v1462, %v1462
          %v1495 = vpack.c.b16 %v1463, %v1463
          %v1496 = vpack.c.b16 %v1464, %v1464
          %v1497 = vpack.c.b16 %v1465, %v1465
          %v1498 = vpack.c.b16 %v1466, %v1466
          %v1499 = vpack.c.b16 %v1467, %v1467
          %v1500 = vpack.c.b16 %v1468, %v1468
          %v1501 = vpack.c.b16 %v1469, %v1469
          %v1502 = vpack.c.b16 %v1470, %v1470
          %v1503 = vpack.c.b16 %v1471, %v1471
          %v1504 = vpack.c.b16 %v1472, %v1472
          %v1505 = vpack.c.b16 %v1473, %v1473
          %v1506 = vpack.c.b16 %v1474, %v1474
          %v1507 = vpack.c.b16 %v1475, %v1475
          %v1508 = vpack.c.b16 %v1476, %v1476
          %v1509 = vpack.c.b16 %v1477, %v1477
          %v1510 = vpack.c.b16 %v1478, %v1478
          %v1511 = vpack.c.b16 %v1479, %v1479
          %v1512 = vpack.c.b16 %v1480, %v1480
          %v1513 = vpack.c.b16 %v1481, %v1481
          %v1514 = vpack.c.b16 %v1482, %v1482
          %v1515 = vpack.c.b16 %v1483, %v1483
          %v1516 = vpack.c.b16 %v1484, %v1484
          %v1517 = vpack.c.b16 %v1485, %v1485
          %v1518 = vpack.c.b16 %v1486, %v1486
          %v1519 = vpack.c.b16 %v1487, %v1487
          %v1520 = vpack.c.b16 %v1488, %v1488
          %v1521 = vpack.c.b16 %v1489, %v1489
          %v1522 = vpack.c.b16 %v1490, %v1490
          %v1523 = vpack.c.b16 %v1491, %v1491
          %v1524 = vpack.c.b16 %v1492, %v1492
          %v1525 = vpack.c.b16 %v1493, %v1493
          %1558 = vst [vmem:[%s220] sm:$0xf] %v1494
          %1559 = vst [vmem:[%s220 + $0x4] sm:$0xf] %v1495
          %1560 = vst [vmem:[%s220 + $0x8] sm:$0xf] %v1496
          %1561 = vst [vmem:[%s220 + $0xc] sm:$0xf] %v1497
          %1562 = vst [vmem:[%s220 + $0x10] sm:$0xf] %v1498
          %1563 = vst [vmem:[%s220 + $0x14] sm:$0xf] %v1499
          %1564 = vst [vmem:[%s220 + $0x18] sm:$0xf] %v1500
          %1565 = vst [vmem:[%s220 + $0x1c] sm:$0xf] %v1501
          %1566 = vst [vmem:[%s220 + $0x20] sm:$0xf] %v1502
          %1567 = vst [vmem:[%s220 + $0x24] sm:$0xf] %v1503
          %1568 = vst [vmem:[%s220 + $0x28] sm:$0xf] %v1504
          %1569 = vst [vmem:[%s220 + $0x2c] sm:$0xf] %v1505
          %1570 = vst [vmem:[%s220 + $0x30] sm:$0xf] %v1506
          %1571 = vst [vmem:[%s220 + $0x34] sm:$0xf] %v1507
          %1572 = vst [vmem:[%s220 + $0x38] sm:$0xf] %v1508
          %1573 = vst [vmem:[%s220 + $0x3c] sm:$0xf] %v1509
          %1574 = vst [vmem:[%s220 + $0x40] sm:$0xf] %v1510
          %1575 = vst [vmem:[%s220 + $0x44] sm:$0xf] %v1511
          %1576 = vst [vmem:[%s220 + $0x48] sm:$0xf] %v1512
          %1577 = vst [vmem:[%s220 + $0x4c] sm:$0xf] %v1513
          %1578 = vst [vmem:[%s220 + $0x50] sm:$0xf] %v1514
          %1579 = vst [vmem:[%s220 + $0x54] sm:$0xf] %v1515
          %1580 = vst [vmem:[%s220 + $0x58] sm:$0xf] %v1516
          %1581 = vst [vmem:[%s220 + $0x5c] sm:$0xf] %v1517
          %1582 = vst [vmem:[%s220 + $0x60] sm:$0xf] %v1518
          %1583 = vst [vmem:[%s220 + $0x64] sm:$0xf] %v1519
          %1584 = vst [vmem:[%s220 + $0x68] sm:$0xf] %v1520
          %1585 = vst [vmem:[%s220 + $0x6c] sm:$0xf] %v1521
          %1586 = vst [vmem:[%s220 + $0x70] sm:$0xf] %v1522
          %1587 = vst [vmem:[%s220 + $0x74] sm:$0xf] %v1523
          %1588 = vst [vmem:[%s220 + $0x78] sm:$0xf] %v1524
          %1589 = vst [vmem:[%s220 + $0x7c] sm:$0xf] %v1525
        $region48: #{tpu_custom_call.1} parent=31 // pred_fallthru
          _
        %s1590 = sand.u32 %s111, 1
        %s1591 = scalar_lea.sflag [#allocation5], %s1590
        %s1592 = sand.u32 %s111, 1
        %s1593 = smul.addr %s1592, 128
        %s1594 = scalar_lea.vmem [#allocation8], %s1593
        // Predicated region
        $region49: #{tpu_custom_call.1} parent=31 // pred_check
          %p1595 = pneg %p121
        $region50: #{tpu_custom_call.1} parent=31 // pred_check_branch
          %1597 = sbr.rel (%p1595) target = $region52
        $region51: #{tpu_custom_call.1} parent=31 // pred_region
          %s1598 = smul.u32 32, %s25
          %s1600 = ssub.s32 2048, 2048
          %1601 = vsyncadd %s1591, %s1600
          %s1602 = smul.addr %s1598, 64
          %s1603 = scalar_lea.hbm %s3, %s1602
          %s1604 = sshll.u32 %s1594, 4
          %s1605 = int_to_ptr.vmem [resolvable:$true] %s1604
          %1610 = dma.vmem_to_hbm [thread:$0]  %s1605, 2048, %s1603, %s1591, 64, 64, 4
        $region52: #{tpu_custom_call.1} parent=31 // pred_fallthru
          _
      $region32: #{tpu_custom_call.1} parent=5 // pred_fallthru
        _
      %p1611 = scmp.le.s32.totalorder 2, %s16
      // Predicated region
      $region53: #{tpu_custom_call.1} parent=5 // pred_check
        %p1612 = pneg %p1611
      $region54: #{tpu_custom_call.1} parent=5 // pred_check_branch
        %1614 = sbr.rel (%p1612) target = $region56
      $region55: #{tpu_custom_call.1} parent=5 // pred_region
        %s1615 = ssub.s32 %s16, 2
        // Predicated region
        $region57: #{tpu_custom_call.1} parent=55 // pred_check
          %p1616 = pneg %p127
        $region58: #{tpu_custom_call.1} parent=55 // pred_check_branch
          %1618 = sbr.rel (%p1616) target = $region60
        $region59: #{tpu_custom_call.1} parent=55 // pred_region
          %s1619 = sand.u32 %s112, 1
          %s1620 = scalar_lea.sflag [#allocation5], %s1619
          %s1621 = sand.u32 %s112, 1
          %s1622 = smul.addr %s1621, 128
          %s1623 = scalar_lea.vmem [#allocation8], %s1622
          %1624 = dma.done %s1620, 2048
        $region60: #{tpu_custom_call.1} parent=55 // pred_fallthru
          _
      $region56: #{tpu_custom_call.1} parent=5 // pred_fallthru
        _
    $region6: #{tpu_custom_call.1} parent=1 // loop_footer
      %s20 = sadd.s32 1, %s16
    $region7: #{tpu_custom_call.1} parent=1 // loop_footer_branch
      %15 = sbr.rel target = $region3
    $region8: #{tpu_custom_call.1} parent=1 // loop_exit
      _
    %1625 = vsyncpa [#allocation4], 1
    %s1626 = scalar_lea.sflag [#allocation4], 1
    %1627 = vsyncpa %s1626, 1
    %1628 = vsyncpa [#allocation7], 1
    %1629 = vsyncpa [#allocation5], 1
    %s1630 = scalar_lea.sflag [#allocation5], 1
    %1631 = vsyncpa %s1630, 1

</llo_original>
